<compile_context>
chip_gen: v7x
topology: tpu7x:2x2x1
jax: 0.10.0
libtpu: 0.0.40
codegen_flags: <defaults>
</compile_context>

<pallas_src>
import jax
import jax.numpy as jnp
import numpy as np
from jax.experimental import pallas as pl
from jax.experimental.pallas import tpu as pltpu


CONFIG = dict(n_conv_layers=2, conv_layer_0=8, conv_layer_1=16, kernel_size=3,
              batch_norm=True, global_avg_pooling=True,
              n_fc_layers=1, fc_layer_0=32)
NUM_CLASSES = 10
BN_EPS = 1e-5

# Height halo: activation rows live at sublane indices [PAD, PAD + H) of the
# padded scratch, so every in-kernel *store* is 8-sublane aligned; only the
# three row-tap *loads* (sublane offsets PAD-1+kh) are unaligned.
PAD = 8


# ---------------------------------------------------------------------------
# Fused kernel
# ---------------------------------------------------------------------------

def _conv_relu_bn_pool(xpad_ref, te_ref, to_ref, b_ref, sc_ref, sh_ref, n, h):
    """One conv block: Conv(3x3, SAME) + bias -> ReLU -> BatchNorm(eval) ->
    MaxPool(2x2, stride 2), entirely in vregs.

    xpad_ref : (n, h + 2*PAD, wi*ci)    padded input, data rows [PAD, PAD+h)
    te_ref   : (ks, wi*ci, (wi//2)*co)  Toeplitz weights, even output columns
    to_ref   : (ks, wi*ci, (wi//2)*co)  Toeplitz weights, odd  output columns
    b_ref    : (1, (wi//2)*co)          conv bias, tiled per output column
    sc_ref   : (1, (wi//2)*co)          BN scale gamma/sqrt(var+eps), tiled
    sh_ref   : (1, (wi//2)*co)          BN shift beta - mean*scale, tiled
    returns  : (n, h//2, (wi//2)*co)    pooled activation, lanes = xo*co + c
    """
    ks = te_ref.shape[0]
    li = te_ref.shape[1]
    lo = te_ref.shape[2]
    pad_h = (ks - 1) // 2
    rows = n * h

    # Conv as `ks` row-tap matmuls against block-Toeplitz matrices (K = wi*ci,
    # N = (wi//2)*co).  Splitting output columns by pooling parity keeps both
    # accumulators lane-dense and makes the column half of the 2x2 max pool a
    # plain elementwise max (no lane shuffles, no strided reloads).
    acc_e = jnp.zeros((rows, lo), jnp.float32)
    acc_o = jnp.zeros((rows, lo), jnp.float32)
    for kh in range(ks):
        r0 = PAD - pad_h + kh
        lhs = xpad_ref[:, r0:r0 + h, :].reshape(rows, li)
        acc_e = acc_e + jnp.dot(lhs, te_ref[kh], preferred_element_type=jnp.float32)
        acc_o = acc_o + jnp.dot(lhs, to_ref[kh], preferred_element_type=jnp.float32)

    # bias -> ReLU -> BatchNorm (eval-mode per-channel scale/shift).
    z_e = jnp.maximum(acc_e + b_ref[...], 0.0) * sc_ref[...] + sh_ref[...]
    z_o = jnp.maximum(acc_o + b_ref[...], 0.0) * sc_ref[...] + sh_ref[...]

    # 2x2 / stride-2 max pool: columns via the parity split above, rows via a
    # major-dim split + elementwise max.
    zc = jnp.maximum(z_e, z_o).reshape(n, h // 2, 2, lo)
    return jnp.maximum(zc[:, :, 0, :], zc[:, :, 1, :])


def _net_kernel(x_ref,
                t0e_ref, t0o_ref, b0_ref, sc0_ref, sh0_ref,
                t1e_ref, t1o_ref, b1_ref, sc1_ref, sh1_ref,
                g_ref, fc1b_ref, fc2w_ref, fc2b_ref,
                o_ref,
                xpad0, xpad1):
    n, h0, l0 = x_ref.shape
    h1 = h0 // 2
    l1 = t0e_ref.shape[2]

    # ----- conv block 0 -----
    # Halo-only zeroing: the interior rows are written exactly once with data.
    xpad0[:, 0:PAD, :] = jnp.zeros((n, PAD, l0), jnp.float32)
    xpad0[:, PAD + h0:PAD + h0 + PAD, :] = jnp.zeros((n, PAD, l0), jnp.float32)
    xpad0[:, PAD:PAD + h0, :] = x_ref[...]
    p0 = _conv_relu_bn_pool(xpad0, t0e_ref, t0o_ref, b0_ref, sc0_ref, sh0_ref,
                            n, h0)                          # (n, h1, l1)

    # ----- conv block 1 -----
    xpad1[:, 0:PAD, :] = jnp.zeros((n, PAD, l1), jnp.float32)
    xpad1[:, PAD + h1:PAD + h1 + PAD, :] = jnp.zeros((n, PAD, l1), jnp.float32)
    xpad1[:, PAD:PAD + h1, :] = p0
    p1 = _conv_relu_bn_pool(xpad1, t1e_ref, t1o_ref, b1_ref, sc1_ref, sh1_ref,
                            n, h1)                          # (n, h1//2, lo1)

    # ----- global average pool + FC head -----
    # The 1/(hf*wf) factor and the per-column -> per-channel reduction of the
    # GAP are folded into g_ref on the host, so the head is two matmuls.
    feat = jnp.sum(p1, axis=1)                              # (n, lo1)
    hid = jnp.dot(feat, g_ref[...], preferred_element_type=jnp.float32) + fc1b_ref[...]
    hid = jnp.maximum(hid, 0.0)
    o_ref[...] = (jnp.dot(hid, fc2w_ref[...], preferred_element_type=jnp.float32)
                  + fc2b_ref[...])


def _full_spec(shape):
    nd = len(shape)
    return pl.BlockSpec(shape, lambda i, _nd=nd: (0,) * _nd)


def net_forward_pallas(x_folded, kp):
    n, h0, l0 = x_folded.shape
    conv0, conv1 = kp["conv"]
    l1 = conv0["te"].shape[2]
    nc = kp["fc2_w"].shape[1]
    h1 = h0 // 2

    args = (x_folded,
            conv0["te"], conv0["to"], conv0["b"], conv0["scale"], conv0["shift"],
            conv1["te"], conv1["to"], conv1["b"], conv1["scale"], conv1["shift"],
            kp["gmat"], kp["fc1_b"], kp["fc2_w"], kp["fc2_b"])

    return pl.pallas_call(
        _net_kernel,
        out_shape=jax.ShapeDtypeStruct((n, nc), jnp.float32),
        grid=(1,),
        in_specs=[_full_spec(a.shape) for a in args],
        out_specs=_full_spec((n, nc)),
        scratch_shapes=[
            pltpu.VMEM((n, h0 + 2 * PAD, l0), jnp.float32),   # xpad0
            pltpu.VMEM((n, h1 + 2 * PAD, l1), jnp.float32),   # xpad1
        ],
    )(*args)


# ---------------------------------------------------------------------------
# Host-side parameter preparation
# ---------------------------------------------------------------------------

def _build_toeplitz(w_hwio, wi, parity):
    """Lower a 3x3 SAME stride-1 conv to per-row-tap block-Toeplitz matrices.

    t[kh, xi*ci + c_in, xo*co + c_out] = w[kh, kw, c_in, c_out] with
    kw = xi - (2*xo + parity) + (ks-1)//2 when that tap is in range, else 0.
    Multiplying a flattened padded input row (wi*ci,) by t[kh] yields the
    kh-tap contribution of all even (parity=0) or odd (parity=1) output
    columns, already in the lane-dense (xo, c_out) layout.
    """
    w_np = np.asarray(w_hwio, np.float32)
    ksh, ksw, ci, co = w_np.shape
    pad = (ksw - 1) // 2
    wo = wi // 2
    t = np.zeros((ksh, wi * ci, wo * co), np.float32)
    for kh in range(ksh):
        for xo in range(wo):
            x = 2 * xo + parity
            for kw in range(ksw):
                xi = x + kw - pad
                if 0 <= xi < wi:
                    t[kh, xi * ci:(xi + 1) * ci, xo * co:(xo + 1) * co] = w_np[kh, kw]
    return jnp.asarray(t)


def prepare_kernel_params(params, input_shape):
    """Precompute Toeplitz conv matrices and lane-tiled per-channel vectors."""
    _, h, w = input_shape
    kp = {"conv": []}
    wi = w
    for lp in params["conv"]:
        co = lp["w"].shape[-1]
        wo = wi // 2
        kp["conv"].append(dict(
            te=_build_toeplitz(lp["w"], wi, 0),
            to=_build_toeplitz(lp["w"], wi, 1),
            b=jnp.tile(lp["b"], wo).reshape(1, wo * co),
            scale=jnp.tile(lp["scale"], wo).reshape(1, wo * co),
            shift=jnp.tile(lp["shift"], wo).reshape(1, wo * co),
        ))
        wi = wo
    n_conv = len(params["conv"])
    hf = h // (2 ** n_conv)
    wf = wi
    # Global-average-pool + first FC folded into one (wf*c_f, fc0) matrix.
    kp["gmat"] = jnp.tile(params["fc1_w"], (wf, 1)) / float(hf * wf)
    kp["fc1_b"] = params["fc1_b"].reshape(1, -1)
    kp["fc2_w"] = params["fc2_w"]
    kp["fc2_b"] = params["fc2_b"].reshape(1, -1)
    return kp


def init_params(key, in_ch):
    params = {"conv": []}
    ks = CONFIG["kernel_size"]
    cin = in_ch
    for i in range(CONFIG["n_conv_layers"]):
        cout = CONFIG[f"conv_layer_{i}"]
        key, kw_, kb, kg, kbe, km, kv = jax.random.split(key, 7)
        w = jax.random.normal(kw_, (ks, ks, cin, cout), jnp.float32) * 0.1
        b = jax.random.normal(kb, (cout,), jnp.float32) * 0.1
        gamma = jax.random.uniform(kg, (cout,), jnp.float32, 0.5, 1.5)
        beta = jax.random.normal(kbe, (cout,), jnp.float32) * 0.1
        r_mean = jax.random.normal(km, (cout,), jnp.float32) * 0.1
        r_var = jax.random.uniform(kv, (cout,), jnp.float32, 0.5, 1.5)
        scale = gamma / jnp.sqrt(r_var + BN_EPS)
        shift = beta - r_mean * scale
        params["conv"].append(dict(w=w, b=b, scale=scale, shift=shift))
        cin = cout
    f1 = CONFIG["fc_layer_0"]
    key, k1, k2, k3, k4 = jax.random.split(key, 5)
    params["fc1_w"] = jax.random.normal(k1, (cin, f1), jnp.float32) * 0.1
    params["fc1_b"] = jax.random.normal(k2, (f1,), jnp.float32) * 0.1
    params["fc2_w"] = jax.random.normal(k3, (f1, NUM_CLASSES), jnp.float32) * 0.1
    params["fc2_b"] = jax.random.normal(k4, (NUM_CLASSES,), jnp.float32) * 0.1
    return params


@jax.jit
def net_forward(x_nchw, kp):
    # NCHW (torch layout) -> lane-dense (n, h, w*c) slab, then one fused kernel.
    n, c, h, w = x_nchw.shape
    x = jnp.transpose(x_nchw, (0, 2, 3, 1)).astype(jnp.float32).reshape(n, h, w * c)
    return net_forward_pallas(x, kp)


# Pure-JAX reference (no Pallas) for correctness checking.
def reference_forward(x_nchw, params):
    y = jnp.transpose(x_nchw, (0, 2, 3, 1)).astype(jnp.float32)
    for lp in params["conv"]:
        y = jax.lax.conv_general_dilated(
            y, lp["w"], window_strides=(1, 1), padding="SAME",
            dimension_numbers=("NHWC", "HWIO", "NHWC"))
        y = jnp.maximum(y + lp["b"], 0.0)
        y = y * lp["scale"] + lp["shift"]
        y = jax.lax.reduce_window(y, -jnp.inf, jax.lax.max,
                                  (1, 2, 2, 1), (1, 2, 2, 1), "VALID")
    y = jnp.mean(y, axis=(1, 2))
    y = jnp.maximum(y @ params["fc1_w"] + params["fc1_b"], 0.0)
    return y @ params["fc2_w"] + params["fc2_b"]


if __name__ == "__main__":
    key = jax.random.PRNGKey(0)
    key, kx, kprm = jax.random.split(key, 3)
    # input_shape=(4, 16, 16), batch=2  (NCHW, like the PyTorch module)
    x = jax.random.normal(kx, (2, 4, 16, 16), jnp.float32)
    params = init_params(kprm, in_ch=4)
    kernel_params = prepare_kernel_params(params, input_shape=(4, 16, 16))

    out = jax.block_until_ready(net_forward(x, kernel_params))
    assert out.shape == (2, NUM_CLASSES), out.shape

    ref = jax.block_until_ready(reference_forward(x, params))
    max_err = float(jnp.max(jnp.abs(out - ref)))
    if max_err > 1e-3:
        raise AssertionError(f"kernel/reference mismatch: {max_err}")

    print("KERNEL_OK")
</pallas_src>

<mosaic_0001>
module attributes {stable_mosaic.version = 11 : i64} {
  func.func @_net_kernel(%arg0: i32, %arg1: memref<2x16x64xf32, #tpu.memory_space<vmem>>, %arg2: memref<3x64x64xf32, #tpu.memory_space<vmem>>, %arg3: memref<3x64x64xf32, #tpu.memory_space<vmem>>, %arg4: memref<1x64xf32, #tpu.memory_space<vmem>>, %arg5: memref<1x64xf32, #tpu.memory_space<vmem>>, %arg6: memref<1x64xf32, #tpu.memory_space<vmem>>, %arg7: memref<3x64x64xf32, #tpu.memory_space<vmem>>, %arg8: memref<3x64x64xf32, #tpu.memory_space<vmem>>, %arg9: memref<1x64xf32, #tpu.memory_space<vmem>>, %arg10: memref<1x64xf32, #tpu.memory_space<vmem>>, %arg11: memref<1x64xf32, #tpu.memory_space<vmem>>, %arg12: memref<64x32xf32, #tpu.memory_space<vmem>>, %arg13: memref<1x32xf32, #tpu.memory_space<vmem>>, %arg14: memref<32x10xf32, #tpu.memory_space<vmem>>, %arg15: memref<1x10xf32, #tpu.memory_space<vmem>>, %arg16: memref<2x10xf32, #tpu.memory_space<vmem>>, %arg17: memref<2x32x64xf32, #tpu.memory_space<vmem>>, %arg18: memref<2x24x64xf32, #tpu.memory_space<vmem>>) attributes {dimension_semantics = [#tpu.dimension_semantics<arbitrary>], iteration_bounds = array<i64: 1>, scalar_prefetch = 0 : i64, scratch_operands = 2 : i64, tpu.core_type = #tpu.core_type<tc>, window_params = [{pipeline_mode = #tpu.pipeline_mode<synchronous>, transform_indices = @transform_0, window_bounds = array<i64: 2, 16, 64>}, {pipeline_mode = #tpu.pipeline_mode<synchronous>, transform_indices = @transform_1, window_bounds = array<i64: 3, 64, 64>}, {pipeline_mode = #tpu.pipeline_mode<synchronous>, transform_indices = @transform_2, window_bounds = array<i64: 3, 64, 64>}, {pipeline_mode = #tpu.pipeline_mode<synchronous>, transform_indices = @transform_3, window_bounds = array<i64: 1, 64>}, {pipeline_mode = #tpu.pipeline_mode<synchronous>, transform_indices = @transform_4, window_bounds = array<i64: 1, 64>}, {pipeline_mode = #tpu.pipeline_mode<synchronous>, transform_indices = @transform_5, window_bounds = array<i64: 1, 64>}, {pipeline_mode = #tpu.pipeline_mode<synchronous>, transform_indices = @transform_6, window_bounds = array<i64: 3, 64, 64>}, {pipeline_mode = #tpu.pipeline_mode<synchronous>, transform_indices = @transform_7, window_bounds = array<i64: 3, 64, 64>}, {pipeline_mode = #tpu.pipeline_mode<synchronous>, transform_indices = @transform_8, window_bounds = array<i64: 1, 64>}, {pipeline_mode = #tpu.pipeline_mode<synchronous>, transform_indices = @transform_9, window_bounds = array<i64: 1, 64>}, {pipeline_mode = #tpu.pipeline_mode<synchronous>, transform_indices = @transform_10, window_bounds = array<i64: 1, 64>}, {pipeline_mode = #tpu.pipeline_mode<synchronous>, transform_indices = @transform_11, window_bounds = array<i64: 64, 32>}, {pipeline_mode = #tpu.pipeline_mode<synchronous>, transform_indices = @transform_12, window_bounds = array<i64: 1, 32>}, {pipeline_mode = #tpu.pipeline_mode<synchronous>, transform_indices = @transform_13, window_bounds = array<i64: 32, 10>}, {pipeline_mode = #tpu.pipeline_mode<synchronous>, transform_indices = @transform_14, window_bounds = array<i64: 1, 10>}, {pipeline_mode = #tpu.pipeline_mode<synchronous>, transform_indices = @transform_15, window_bounds = array<i64: 2, 10>}]} {
    %cst = arith.constant 0.000000e+00 : f32
    %0 = vector.broadcast %cst : f32 to vector<2x8x64xf32>
    %c0 = arith.constant 0 : index
    %c0_0 = arith.constant 0 : index
    %c0_1 = arith.constant 0 : index
    %1 = vector.load %arg17[%c0, %c0_0, %c0_1] : memref<2x32x64xf32, #tpu.memory_space<vmem>>, vector<2x8x64xf32>
    tpu.vector_store %arg17[%c0, %c0_0, %c0_1], %0 {strides = array<i32>} : memref<2x32x64xf32, #tpu.memory_space<vmem>>, vector<2x8x64xf32>,
    %cst_2 = arith.constant 0.000000e+00 : f32
    %2 = vector.broadcast %cst_2 : f32 to vector<2x8x64xf32>
    %c0_3 = arith.constant 0 : index
    %c24 = arith.constant 24 : index
    %c0_4 = arith.constant 0 : index
    %3 = vector.load %arg17[%c0_3, %c24, %c0_4] : memref<2x32x64xf32, #tpu.memory_space<vmem>>, vector<2x8x64xf32>
    tpu.vector_store %arg17[%c0_3, %c24, %c0_4], %2 {strides = array<i32>} : memref<2x32x64xf32, #tpu.memory_space<vmem>>, vector<2x8x64xf32>,
    %c0_5 = arith.constant 0 : index
    %c0_6 = arith.constant 0 : index
    %c0_7 = arith.constant 0 : index
    %4 = vector.load %arg1[%c0_5, %c0_6, %c0_7] : memref<2x16x64xf32, #tpu.memory_space<vmem>>, vector<2x16x64xf32>
    %c0_8 = arith.constant 0 : index
    %c8 = arith.constant 8 : index
    %c0_9 = arith.constant 0 : index
    %5 = vector.load %arg17[%c0_8, %c8, %c0_9] : memref<2x32x64xf32, #tpu.memory_space<vmem>>, vector<2x16x64xf32>
    tpu.vector_store %arg17[%c0_8, %c8, %c0_9], %4 {strides = array<i32>} : memref<2x32x64xf32, #tpu.memory_space<vmem>>, vector<2x16x64xf32>,
    %cst_10 = arith.constant 0.000000e+00 : f32
    %6 = vector.broadcast %cst_10 : f32 to vector<32x64xf32>
    %cst_11 = arith.constant 0.000000e+00 : f32
    %7 = vector.broadcast %cst_11 : f32 to vector<32x64xf32>
    %c0_12 = arith.constant 0 : index
    %c7 = arith.constant 7 : index
    %c0_13 = arith.constant 0 : index
    %8 = vector.load %arg17[%c0_12, %c7, %c0_13] : memref<2x32x64xf32, #tpu.memory_space<vmem>>, vector<2x16x64xf32>
    %9 = vector.shape_cast %8 : vector<2x16x64xf32> to vector<32x64xf32>
    %c0_14 = arith.constant 0 : index
    %c0_15 = arith.constant 0 : index
    %c0_16 = arith.constant 0 : index
    %10 = vector.load %arg2[%c0_14, %c0_15, %c0_16] : memref<3x64x64xf32, #tpu.memory_space<vmem>>, vector<1x64x64xf32>
    %11 = vector.shape_cast %10 : vector<1x64x64xf32> to vector<64x64xf32>
    %cst_17 = arith.constant dense<0.000000e+00> : vector<32x64xf32>
    %12 = tpu.matmul %9, %11, %cst_17 {dimension_numbers = #tpu.dot_dimension_numbers<[1], [0], [0], [1], [0, 0, 1, 1], [], []>} : vector<32x64xf32>, vector<64x64xf32>, vector<32x64xf32> -> vector<32x64xf32>
    %13 = arith.addf %6, %12 : vector<32x64xf32>
    %c0_18 = arith.constant 0 : index
    %c0_19 = arith.constant 0 : index
    %c0_20 = arith.constant 0 : index
    %14 = vector.load %arg3[%c0_18, %c0_19, %c0_20] : memref<3x64x64xf32, #tpu.memory_space<vmem>>, vector<1x64x64xf32>
    %15 = vector.shape_cast %14 : vector<1x64x64xf32> to vector<64x64xf32>
    %cst_21 = arith.constant dense<0.000000e+00> : vector<32x64xf32>
    %16 = tpu.matmul %9, %15, %cst_21 {dimension_numbers = #tpu.dot_dimension_numbers<[1], [0], [0], [1], [0, 0, 1, 1], [], []>} : vector<32x64xf32>, vector<64x64xf32>, vector<32x64xf32> -> vector<32x64xf32>
    %17 = arith.addf %7, %16 : vector<32x64xf32>
    %c0_22 = arith.constant 0 : index
    %c8_23 = arith.constant 8 : index
    %c0_24 = arith.constant 0 : index
    %18 = vector.load %arg17[%c0_22, %c8_23, %c0_24] : memref<2x32x64xf32, #tpu.memory_space<vmem>>, vector<2x16x64xf32>
    %19 = vector.shape_cast %18 : vector<2x16x64xf32> to vector<32x64xf32>
    %c1 = arith.constant 1 : index
    %c0_25 = arith.constant 0 : index
    %c0_26 = arith.constant 0 : index
    %20 = vector.load %arg2[%c1, %c0_25, %c0_26] : memref<3x64x64xf32, #tpu.memory_space<vmem>>, vector<1x64x64xf32>
    %21 = vector.shape_cast %20 : vector<1x64x64xf32> to vector<64x64xf32>
    %cst_27 = arith.constant dense<0.000000e+00> : vector<32x64xf32>
    %22 = tpu.matmul %19, %21, %cst_27 {dimension_numbers = #tpu.dot_dimension_numbers<[1], [0], [0], [1], [0, 0, 1, 1], [], []>} : vector<32x64xf32>, vector<64x64xf32>, vector<32x64xf32> -> vector<32x64xf32>
    %23 = arith.addf %13, %22 : vector<32x64xf32>
    %c1_28 = arith.constant 1 : index
    %c0_29 = arith.constant 0 : index
    %c0_30 = arith.constant 0 : index
    %24 = vector.load %arg3[%c1_28, %c0_29, %c0_30] : memref<3x64x64xf32, #tpu.memory_space<vmem>>, vector<1x64x64xf32>
    %25 = vector.shape_cast %24 : vector<1x64x64xf32> to vector<64x64xf32>
    %cst_31 = arith.constant dense<0.000000e+00> : vector<32x64xf32>
    %26 = tpu.matmul %19, %25, %cst_31 {dimension_numbers = #tpu.dot_dimension_numbers<[1], [0], [0], [1], [0, 0, 1, 1], [], []>} : vector<32x64xf32>, vector<64x64xf32>, vector<32x64xf32> -> vector<32x64xf32>
    %27 = arith.addf %17, %26 : vector<32x64xf32>
    %c0_32 = arith.constant 0 : index
    %c9 = arith.constant 9 : index
    %c0_33 = arith.constant 0 : index
    %28 = vector.load %arg17[%c0_32, %c9, %c0_33] : memref<2x32x64xf32, #tpu.memory_space<vmem>>, vector<2x16x64xf32>
    %29 = vector.shape_cast %28 : vector<2x16x64xf32> to vector<32x64xf32>
    %c2 = arith.constant 2 : index
    %c0_34 = arith.constant 0 : index
    %c0_35 = arith.constant 0 : index
    %30 = vector.load %arg2[%c2, %c0_34, %c0_35] : memref<3x64x64xf32, #tpu.memory_space<vmem>>, vector<1x64x64xf32>
    %31 = vector.shape_cast %30 : vector<1x64x64xf32> to vector<64x64xf32>
    %cst_36 = arith.constant dense<0.000000e+00> : vector<32x64xf32>
    %32 = tpu.matmul %29, %31, %cst_36 {dimension_numbers = #tpu.dot_dimension_numbers<[1], [0], [0], [1], [0, 0, 1, 1], [], []>} : vector<32x64xf32>, vector<64x64xf32>, vector<32x64xf32> -> vector<32x64xf32>
    %33 = arith.addf %23, %32 : vector<32x64xf32>
    %c2_37 = arith.constant 2 : index
    %c0_38 = arith.constant 0 : index
    %c0_39 = arith.constant 0 : index
    %34 = vector.load %arg3[%c2_37, %c0_38, %c0_39] : memref<3x64x64xf32, #tpu.memory_space<vmem>>, vector<1x64x64xf32>
    %35 = vector.shape_cast %34 : vector<1x64x64xf32> to vector<64x64xf32>
    %cst_40 = arith.constant dense<0.000000e+00> : vector<32x64xf32>
    %36 = tpu.matmul %29, %35, %cst_40 {dimension_numbers = #tpu.dot_dimension_numbers<[1], [0], [0], [1], [0, 0, 1, 1], [], []>} : vector<32x64xf32>, vector<64x64xf32>, vector<32x64xf32> -> vector<32x64xf32>
    %37 = arith.addf %27, %36 : vector<32x64xf32>
    %c0_41 = arith.constant 0 : index
    %c0_42 = arith.constant 0 : index
    %38 = vector.load %arg4[%c0_41, %c0_42] : memref<1x64xf32, #tpu.memory_space<vmem>>, vector<1x64xf32>
    %39 = vector.broadcast %38 : vector<1x64xf32> to vector<32x64xf32>
    %40 = arith.addf %33, %39 : vector<32x64xf32>
    %cst_43 = arith.constant 0.000000e+00 : f32
    %41 = vector.broadcast %cst_43 : f32 to vector<32x64xf32>
    %42 = arith.maximumf %40, %41 : vector<32x64xf32>
    %c0_44 = arith.constant 0 : index
    %c0_45 = arith.constant 0 : index
    %43 = vector.load %arg5[%c0_44, %c0_45] : memref<1x64xf32, #tpu.memory_space<vmem>>, vector<1x64xf32>
    %44 = vector.broadcast %43 : vector<1x64xf32> to vector<32x64xf32>
    %45 = arith.mulf %42, %44 : vector<32x64xf32>
    %c0_46 = arith.constant 0 : index
    %c0_47 = arith.constant 0 : index
    %46 = vector.load %arg6[%c0_46, %c0_47] : memref<1x64xf32, #tpu.memory_space<vmem>>, vector<1x64xf32>
    %47 = vector.broadcast %46 : vector<1x64xf32> to vector<32x64xf32>
    %48 = arith.addf %45, %47 : vector<32x64xf32>
    %c0_48 = arith.constant 0 : index
    %c0_49 = arith.constant 0 : index
    %49 = vector.load %arg4[%c0_48, %c0_49] : memref<1x64xf32, #tpu.memory_space<vmem>>, vector<1x64xf32>
    %50 = vector.broadcast %49 : vector<1x64xf32> to vector<32x64xf32>
    %51 = arith.addf %37, %50 : vector<32x64xf32>
    %cst_50 = arith.constant 0.000000e+00 : f32
    %52 = vector.broadcast %cst_50 : f32 to vector<32x64xf32>
    %53 = arith.maximumf %51, %52 : vector<32x64xf32>
    %c0_51 = arith.constant 0 : index
    %c0_52 = arith.constant 0 : index
    %54 = vector.load %arg5[%c0_51, %c0_52] : memref<1x64xf32, #tpu.memory_space<vmem>>, vector<1x64xf32>
    %55 = vector.broadcast %54 : vector<1x64xf32> to vector<32x64xf32>
    %56 = arith.mulf %53, %55 : vector<32x64xf32>
    %c0_53 = arith.constant 0 : index
    %c0_54 = arith.constant 0 : index
    %57 = vector.load %arg6[%c0_53, %c0_54] : memref<1x64xf32, #tpu.memory_space<vmem>>, vector<1x64xf32>
    %58 = vector.broadcast %57 : vector<1x64xf32> to vector<32x64xf32>
    %59 = arith.addf %56, %58 : vector<32x64xf32>
    %60 = arith.maximumf %48, %59 : vector<32x64xf32>
    %61 = vector.shape_cast %60 : vector<32x64xf32> to vector<2x8x2x64xf32>
    %62 = vector.extract_strided_slice %61 {offsets = [0, 0, 0, 0], sizes = [2, 8, 1, 64], strides = [1, 1, 1, 1]} : vector<2x8x2x64xf32> to vector<2x8x1x64xf32>
    %63 = vector.shape_cast %62 : vector<2x8x1x64xf32> to vector<2x8x64xf32>
    %64 = vector.extract_strided_slice %61 {offsets = [0, 0, 1, 0], sizes = [2, 8, 1, 64], strides = [1, 1, 1, 1]} : vector<2x8x2x64xf32> to vector<2x8x1x64xf32>
    %65 = vector.shape_cast %64 : vector<2x8x1x64xf32> to vector<2x8x64xf32>
    %66 = arith.maximumf %63, %65 : vector<2x8x64xf32>
    %cst_55 = arith.constant 0.000000e+00 : f32
    %67 = vector.broadcast %cst_55 : f32 to vector<2x8x64xf32>
    %c0_56 = arith.constant 0 : index
    %c0_57 = arith.constant 0 : index
    %c0_58 = arith.constant 0 : index
    %68 = vector.load %arg18[%c0_56, %c0_57, %c0_58] : memref<2x24x64xf32, #tpu.memory_space<vmem>>, vector<2x8x64xf32>
    tpu.vector_store %arg18[%c0_56, %c0_57, %c0_58], %67 {strides = array<i32>} : memref<2x24x64xf32, #tpu.memory_space<vmem>>, vector<2x8x64xf32>,
    %cst_59 = arith.constant 0.000000e+00 : f32
    %69 = vector.broadcast %cst_59 : f32 to vector<2x8x64xf32>
    %c0_60 = arith.constant 0 : index
    %c16 = arith.constant 16 : index
    %c0_61 = arith.constant 0 : index
    %70 = vector.load %arg18[%c0_60, %c16, %c0_61] : memref<2x24x64xf32, #tpu.memory_space<vmem>>, vector<2x8x64xf32>
    tpu.vector_store %arg18[%c0_60, %c16, %c0_61], %69 {strides = array<i32>} : memref<2x24x64xf32, #tpu.memory_space<vmem>>, vector<2x8x64xf32>,
    %c0_62 = arith.constant 0 : index
    %c8_63 = arith.constant 8 : index
    %c0_64 = arith.constant 0 : index
    %71 = vector.load %arg18[%c0_62, %c8_63, %c0_64] : memref<2x24x64xf32, #tpu.memory_space<vmem>>, vector<2x8x64xf32>
    tpu.vector_store %arg18[%c0_62, %c8_63, %c0_64], %66 {strides = array<i32>} : memref<2x24x64xf32, #tpu.memory_space<vmem>>, vector<2x8x64xf32>,
    %cst_65 = arith.constant 0.000000e+00 : f32
    %72 = vector.broadcast %cst_65 : f32 to vector<16x64xf32>
    %cst_66 = arith.constant 0.000000e+00 : f32
    %73 = vector.broadcast %cst_66 : f32 to vector<16x64xf32>
    %c0_67 = arith.constant 0 : index
    %c7_68 = arith.constant 7 : index
    %c0_69 = arith.constant 0 : index
    %74 = vector.load %arg18[%c0_67, %c7_68, %c0_69] : memref<2x24x64xf32, #tpu.memory_space<vmem>>, vector<2x8x64xf32>
    %75 = vector.shape_cast %74 : vector<2x8x64xf32> to vector<16x64xf32>
    %c0_70 = arith.constant 0 : index
    %c0_71 = arith.constant 0 : index
    %c0_72 = arith.constant 0 : index
    %76 = vector.load %arg7[%c0_70, %c0_71, %c0_72] : memref<3x64x64xf32, #tpu.memory_space<vmem>>, vector<1x64x64xf32>
    %77 = vector.shape_cast %76 : vector<1x64x64xf32> to vector<64x64xf32>
    %cst_73 = arith.constant dense<0.000000e+00> : vector<16x64xf32>
    %78 = tpu.matmul %75, %77, %cst_73 {dimension_numbers = #tpu.dot_dimension_numbers<[1], [0], [0], [1], [0, 0, 1, 1], [], []>} : vector<16x64xf32>, vector<64x64xf32>, vector<16x64xf32> -> vector<16x64xf32>
    %79 = arith.addf %72, %78 : vector<16x64xf32>
    %c0_74 = arith.constant 0 : index
    %c0_75 = arith.constant 0 : index
    %c0_76 = arith.constant 0 : index
    %80 = vector.load %arg8[%c0_74, %c0_75, %c0_76] : memref<3x64x64xf32, #tpu.memory_space<vmem>>, vector<1x64x64xf32>
    %81 = vector.shape_cast %80 : vector<1x64x64xf32> to vector<64x64xf32>
    %cst_77 = arith.constant dense<0.000000e+00> : vector<16x64xf32>
    %82 = tpu.matmul %75, %81, %cst_77 {dimension_numbers = #tpu.dot_dimension_numbers<[1], [0], [0], [1], [0, 0, 1, 1], [], []>} : vector<16x64xf32>, vector<64x64xf32>, vector<16x64xf32> -> vector<16x64xf32>
    %83 = arith.addf %73, %82 : vector<16x64xf32>
    %c0_78 = arith.constant 0 : index
    %c8_79 = arith.constant 8 : index
    %c0_80 = arith.constant 0 : index
    %84 = vector.load %arg18[%c0_78, %c8_79, %c0_80] : memref<2x24x64xf32, #tpu.memory_space<vmem>>, vector<2x8x64xf32>
    %85 = vector.shape_cast %84 : vector<2x8x64xf32> to vector<16x64xf32>
    %c1_81 = arith.constant 1 : index
    %c0_82 = arith.constant 0 : index
    %c0_83 = arith.constant 0 : index
    %86 = vector.load %arg7[%c1_81, %c0_82, %c0_83] : memref<3x64x64xf32, #tpu.memory_space<vmem>>, vector<1x64x64xf32>
    %87 = vector.shape_cast %86 : vector<1x64x64xf32> to vector<64x64xf32>
    %cst_84 = arith.constant dense<0.000000e+00> : vector<16x64xf32>
    %88 = tpu.matmul %85, %87, %cst_84 {dimension_numbers = #tpu.dot_dimension_numbers<[1], [0], [0], [1], [0, 0, 1, 1], [], []>} : vector<16x64xf32>, vector<64x64xf32>, vector<16x64xf32> -> vector<16x64xf32>
    %89 = arith.addf %79, %88 : vector<16x64xf32>
    %c1_85 = arith.constant 1 : index
    %c0_86 = arith.constant 0 : index
    %c0_87 = arith.constant 0 : index
    %90 = vector.load %arg8[%c1_85, %c0_86, %c0_87] : memref<3x64x64xf32, #tpu.memory_space<vmem>>, vector<1x64x64xf32>
    %91 = vector.shape_cast %90 : vector<1x64x64xf32> to vector<64x64xf32>
    %cst_88 = arith.constant dense<0.000000e+00> : vector<16x64xf32>
    %92 = tpu.matmul %85, %91, %cst_88 {dimension_numbers = #tpu.dot_dimension_numbers<[1], [0], [0], [1], [0, 0, 1, 1], [], []>} : vector<16x64xf32>, vector<64x64xf32>, vector<16x64xf32> -> vector<16x64xf32>
    %93 = arith.addf %83, %92 : vector<16x64xf32>
    %c0_89 = arith.constant 0 : index
    %c9_90 = arith.constant 9 : index
    %c0_91 = arith.constant 0 : index
    %94 = vector.load %arg18[%c0_89, %c9_90, %c0_91] : memref<2x24x64xf32, #tpu.memory_space<vmem>>, vector<2x8x64xf32>
    %95 = vector.shape_cast %94 : vector<2x8x64xf32> to vector<16x64xf32>
    %c2_92 = arith.constant 2 : index
    %c0_93 = arith.constant 0 : index
    %c0_94 = arith.constant 0 : index
    %96 = vector.load %arg7[%c2_92, %c0_93, %c0_94] : memref<3x64x64xf32, #tpu.memory_space<vmem>>, vector<1x64x64xf32>
    %97 = vector.shape_cast %96 : vector<1x64x64xf32> to vector<64x64xf32>
    %cst_95 = arith.constant dense<0.000000e+00> : vector<16x64xf32>
    %98 = tpu.matmul %95, %97, %cst_95 {dimension_numbers = #tpu.dot_dimension_numbers<[1], [0], [0], [1], [0, 0, 1, 1], [], []>} : vector<16x64xf32>, vector<64x64xf32>, vector<16x64xf32> -> vector<16x64xf32>
    %99 = arith.addf %89, %98 : vector<16x64xf32>
    %c2_96 = arith.constant 2 : index
    %c0_97 = arith.constant 0 : index
    %c0_98 = arith.constant 0 : index
    %100 = vector.load %arg8[%c2_96, %c0_97, %c0_98] : memref<3x64x64xf32, #tpu.memory_space<vmem>>, vector<1x64x64xf32>
    %101 = vector.shape_cast %100 : vector<1x64x64xf32> to vector<64x64xf32>
    %cst_99 = arith.constant dense<0.000000e+00> : vector<16x64xf32>
    %102 = tpu.matmul %95, %101, %cst_99 {dimension_numbers = #tpu.dot_dimension_numbers<[1], [0], [0], [1], [0, 0, 1, 1], [], []>} : vector<16x64xf32>, vector<64x64xf32>, vector<16x64xf32> -> vector<16x64xf32>
    %103 = arith.addf %93, %102 : vector<16x64xf32>
    %c0_100 = arith.constant 0 : index
    %c0_101 = arith.constant 0 : index
    %104 = vector.load %arg9[%c0_100, %c0_101] : memref<1x64xf32, #tpu.memory_space<vmem>>, vector<1x64xf32>
    %105 = vector.broadcast %104 : vector<1x64xf32> to vector<16x64xf32>
    %106 = arith.addf %99, %105 : vector<16x64xf32>
    %cst_102 = arith.constant 0.000000e+00 : f32
    %107 = vector.broadcast %cst_102 : f32 to vector<16x64xf32>
    %108 = arith.maximumf %106, %107 : vector<16x64xf32>
    %c0_103 = arith.constant 0 : index
    %c0_104 = arith.constant 0 : index
    %109 = vector.load %arg10[%c0_103, %c0_104] : memref<1x64xf32, #tpu.memory_space<vmem>>, vector<1x64xf32>
    %110 = vector.broadcast %109 : vector<1x64xf32> to vector<16x64xf32>
    %111 = arith.mulf %108, %110 : vector<16x64xf32>
    %c0_105 = arith.constant 0 : index
    %c0_106 = arith.constant 0 : index
    %112 = vector.load %arg11[%c0_105, %c0_106] : memref<1x64xf32, #tpu.memory_space<vmem>>, vector<1x64xf32>
    %113 = vector.broadcast %112 : vector<1x64xf32> to vector<16x64xf32>
    %114 = arith.addf %111, %113 : vector<16x64xf32>
    %c0_107 = arith.constant 0 : index
    %c0_108 = arith.constant 0 : index
    %115 = vector.load %arg9[%c0_107, %c0_108] : memref<1x64xf32, #tpu.memory_space<vmem>>, vector<1x64xf32>
    %116 = vector.broadcast %115 : vector<1x64xf32> to vector<16x64xf32>
    %117 = arith.addf %103, %116 : vector<16x64xf32>
    %cst_109 = arith.constant 0.000000e+00 : f32
    %118 = vector.broadcast %cst_109 : f32 to vector<16x64xf32>
    %119 = arith.maximumf %117, %118 : vector<16x64xf32>
    %c0_110 = arith.constant 0 : index
    %c0_111 = arith.constant 0 : index
    %120 = vector.load %arg10[%c0_110, %c0_111] : memref<1x64xf32, #tpu.memory_space<vmem>>, vector<1x64xf32>
    %121 = vector.broadcast %120 : vector<1x64xf32> to vector<16x64xf32>
    %122 = arith.mulf %119, %121 : vector<16x64xf32>
    %c0_112 = arith.constant 0 : index
    %c0_113 = arith.constant 0 : index
    %123 = vector.load %arg11[%c0_112, %c0_113] : memref<1x64xf32, #tpu.memory_space<vmem>>, vector<1x64xf32>
    %124 = vector.broadcast %123 : vector<1x64xf32> to vector<16x64xf32>
    %125 = arith.addf %122, %124 : vector<16x64xf32>
    %126 = arith.maximumf %114, %125 : vector<16x64xf32>
    %127 = vector.shape_cast %126 : vector<16x64xf32> to vector<2x4x2x64xf32>
    %128 = vector.extract_strided_slice %127 {offsets = [0, 0, 0, 0], sizes = [2, 4, 1, 64], strides = [1, 1, 1, 1]} : vector<2x4x2x64xf32> to vector<2x4x1x64xf32>
    %129 = vector.shape_cast %128 : vector<2x4x1x64xf32> to vector<2x4x64xf32>
    %130 = vector.extract_strided_slice %127 {offsets = [0, 0, 1, 0], sizes = [2, 4, 1, 64], strides = [1, 1, 1, 1]} : vector<2x4x2x64xf32> to vector<2x4x1x64xf32>
    %131 = vector.shape_cast %130 : vector<2x4x1x64xf32> to vector<2x4x64xf32>
    %132 = arith.maximumf %129, %131 : vector<2x4x64xf32>
    %cst_114 = arith.constant dense<0.000000e+00> : vector<2x64xf32>
    %133 = vector.multi_reduction <add>, %132, %cst_114 [1] : vector<2x4x64xf32> to vector<2x64xf32>
    %c0_115 = arith.constant 0 : index
    %c0_116 = arith.constant 0 : index
    %134 = vector.load %arg12[%c0_115, %c0_116] : memref<64x32xf32, #tpu.memory_space<vmem>>, vector<64x32xf32>
    %cst_117 = arith.constant dense<0.000000e+00> : vector<2x32xf32>
    %135 = tpu.matmul %133, %134, %cst_117 {dimension_numbers = #tpu.dot_dimension_numbers<[1], [0], [0], [1], [0, 0, 1, 1], [], []>} : vector<2x64xf32>, vector<64x32xf32>, vector<2x32xf32> -> vector<2x32xf32>
    %c0_118 = arith.constant 0 : index
    %c0_119 = arith.constant 0 : index
    %136 = vector.load %arg13[%c0_118, %c0_119] : memref<1x32xf32, #tpu.memory_space<vmem>>, vector<1x32xf32>
    %137 = vector.broadcast %136 : vector<1x32xf32> to vector<2x32xf32>
    %138 = arith.addf %135, %137 : vector<2x32xf32>
    %cst_120 = arith.constant 0.000000e+00 : f32
    %139 = vector.broadcast %cst_120 : f32 to vector<2x32xf32>
    %140 = arith.maximumf %138, %139 : vector<2x32xf32>
    %c0_121 = arith.constant 0 : index
    %c0_122 = arith.constant 0 : index
    %141 = vector.load %arg14[%c0_121, %c0_122] : memref<32x10xf32, #tpu.memory_space<vmem>>, vector<32x10xf32>
    %cst_123 = arith.constant dense<0.000000e+00> : vector<2x10xf32>
    %142 = tpu.matmul %140, %141, %cst_123 {dimension_numbers = #tpu.dot_dimension_numbers<[1], [0], [0], [1], [0, 0, 1, 1], [], []>} : vector<2x32xf32>, vector<32x10xf32>, vector<2x10xf32> -> vector<2x10xf32>
    %c0_124 = arith.constant 0 : index
    %c0_125 = arith.constant 0 : index
    %143 = vector.load %arg15[%c0_124, %c0_125] : memref<1x10xf32, #tpu.memory_space<vmem>>, vector<1x10xf32>
    %144 = vector.broadcast %143 : vector<1x10xf32> to vector<2x10xf32>
    %145 = arith.addf %142, %144 : vector<2x10xf32>
    %c0_126 = arith.constant 0 : index
    %c0_127 = arith.constant 0 : index
    %146 = vector.load %arg16[%c0_126, %c0_127] : memref<2x10xf32, #tpu.memory_space<vmem>>, vector<2x10xf32>
    tpu.vector_store %arg16[%c0_126, %c0_127], %145 {strides = array<i32>} : memref<2x10xf32, #tpu.memory_space<vmem>>, vector<2x10xf32>,
    return
  }
  func.func @transform_0(%arg0: i32) -> (i32, i32, i32) {
    %c0_i32 = arith.constant 0 : i32
    %c0_i32_0 = arith.constant 0 : i32
    %c0_i32_1 = arith.constant 0 : i32
    %c0_i32_2 = arith.constant 0 : i32
    return %c0_i32, %c0_i32_0, %c0_i32_1 : i32, i32, i32
  }
  func.func @transform_1(%arg0: i32) -> (i32, i32, i32) {
    %c0_i32 = arith.constant 0 : i32
    %c0_i32_0 = arith.constant 0 : i32
    %c0_i32_1 = arith.constant 0 : i32
    %c0_i32_2 = arith.constant 0 : i32
    return %c0_i32, %c0_i32_0, %c0_i32_1 : i32, i32, i32
  }
  func.func @transform_2(%arg0: i32) -> (i32, i32, i32) {
    %c0_i32 = arith.constant 0 : i32
    %c0_i32_0 = arith.constant 0 : i32
    %c0_i32_1 = arith.constant 0 : i32
    %c0_i32_2 = arith.constant 0 : i32
    return %c0_i32, %c0_i32_0, %c0_i32_1 : i32, i32, i32
  }
  func.func @transform_3(%arg0: i32) -> (i32, i32) {
    %c0_i32 = arith.constant 0 : i32
    %c0_i32_0 = arith.constant 0 : i32
    %c0_i32_1 = arith.constant 0 : i32
    return %c0_i32, %c0_i32_0 : i32, i32
  }
  func.func @transform_4(%arg0: i32) -> (i32, i32) {
    %c0_i32 = arith.constant 0 : i32
    %c0_i32_0 = arith.constant 0 : i32
    %c0_i32_1 = arith.constant 0 : i32
    return %c0_i32, %c0_i32_0 : i32, i32
  }
  func.func @transform_5(%arg0: i32) -> (i32, i32) {
    %c0_i32 = arith.constant 0 : i32
    %c0_i32_0 = arith.constant 0 : i32
    %c0_i32_1 = arith.constant 0 : i32
    return %c0_i32, %c0_i32_0 : i32, i32
  }
  func.func @transform_6(%arg0: i32) -> (i32, i32, i32) {
    %c0_i32 = arith.constant 0 : i32
    %c0_i32_0 = arith.constant 0 : i32
    %c0_i32_1 = arith.constant 0 : i32
    %c0_i32_2 = arith.constant 0 : i32
    return %c0_i32, %c0_i32_0, %c0_i32_1 : i32, i32, i32
  }
  func.func @transform_7(%arg0: i32) -> (i32, i32, i32) {
    %c0_i32 = arith.constant 0 : i32
    %c0_i32_0 = arith.constant 0 : i32
    %c0_i32_1 = arith.constant 0 : i32
    %c0_i32_2 = arith.constant 0 : i32
    return %c0_i32, %c0_i32_0, %c0_i32_1 : i32, i32, i32
  }
  func.func @transform_8(%arg0: i32) -> (i32, i32) {
    %c0_i32 = arith.constant 0 : i32
    %c0_i32_0 = arith.constant 0 : i32
    %c0_i32_1 = arith.constant 0 : i32
    return %c0_i32, %c0_i32_0 : i32, i32
  }
  func.func @transform_9(%arg0: i32) -> (i32, i32) {
    %c0_i32 = arith.constant 0 : i32
    %c0_i32_0 = arith.constant 0 : i32
    %c0_i32_1 = arith.constant 0 : i32
    return %c0_i32, %c0_i32_0 : i32, i32
  }
  func.func @transform_10(%arg0: i32) -> (i32, i32) {
    %c0_i32 = arith.constant 0 : i32
    %c0_i32_0 = arith.constant 0 : i32
    %c0_i32_1 = arith.constant 0 : i32
    return %c0_i32, %c0_i32_0 : i32, i32
  }
  func.func @transform_11(%arg0: i32) -> (i32, i32) {
    %c0_i32 = arith.constant 0 : i32
    %c0_i32_0 = arith.constant 0 : i32
    %c0_i32_1 = arith.constant 0 : i32
    return %c0_i32, %c0_i32_0 : i32, i32
  }
  func.func @transform_12(%arg0: i32) -> (i32, i32) {
    %c0_i32 = arith.constant 0 : i32
    %c0_i32_0 = arith.constant 0 : i32
    %c0_i32_1 = arith.constant 0 : i32
    return %c0_i32, %c0_i32_0 : i32, i32
  }
  func.func @transform_13(%arg0: i32) -> (i32, i32) {
    %c0_i32 = arith.constant 0 : i32
    %c0_i32_0 = arith.constant 0 : i32
    %c0_i32_1 = arith.constant 0 : i32
    return %c0_i32, %c0_i32_0 : i32, i32
  }
  func.func @transform_14(%arg0: i32) -> (i32, i32) {
    %c0_i32 = arith.constant 0 : i32
    %c0_i32_0 = arith.constant 0 : i32
    %c0_i32_1 = arith.constant 0 : i32
    return %c0_i32, %c0_i32_0 : i32, i32
  }
  func.func @transform_15(%arg0: i32) -> (i32, i32) {
    %c0_i32 = arith.constant 0 : i32
    %c0_i32_0 = arith.constant 0 : i32
    %c0_i32_1 = arith.constant 0 : i32
    return %c0_i32, %c0_i32_0 : i32, i32
  }
}

</mosaic_0001>

<llo_original>
// kernel: net_forward.1
$region0: #{net_forward.1}
  #allocation0 [shape = 'u32[]', space=smem, size = 0x4, offset = 0x4, fixed_abs, tag = 'smem constant byte address 0x4 - core index']
  #allocation1 [shape = 'u32[144,128]{1,0:T(1,128)}', space=vmem, size = 0x12000, scoped, tag = 'internal scratch']
  #allocation2 [shape = 'f32[2,32,64]{2,1,0:T(8,128)}', space=vmem, size = 0x8000, scoped, tag = 'scratch operand']
  #allocation3 [shape = 'f32[2,24,64]{2,1,0:T(8,128)}', space=vmem, size = 0x6000, scoped, tag = 'scratch operand']
  %s0 = inlined_call_operand.vmem [shape: f32[2,16,64], index: 0, kind: input, shape index: {}]
  %s1 = inlined_call_operand.vmem [shape: f32[3,64,64], index: 1, kind: input, shape index: {}]
  %s2 = inlined_call_operand.vmem [shape: f32[3,64,64], index: 2, kind: input, shape index: {}]
  %s3 = inlined_call_operand.vmem [shape: f32[1,64], index: 3, kind: input, shape index: {}]
  %s4 = inlined_call_operand.vmem [shape: f32[1,64], index: 4, kind: input, shape index: {}]
  %s5 = inlined_call_operand.vmem [shape: f32[1,64], index: 5, kind: input, shape index: {}]
  %s6 = inlined_call_operand.hbm [shape: f32[3,64,64], index: 6, kind: input, shape index: {}]
  %s7 = inlined_call_operand.hbm [shape: f32[3,64,64], index: 7, kind: input, shape index: {}]
  %s8 = inlined_call_operand.vmem [shape: f32[1,64], index: 8, kind: input, shape index: {}]
  %s9 = inlined_call_operand.vmem [shape: f32[1,64], index: 9, kind: input, shape index: {}]
  %s10 = inlined_call_operand.vmem [shape: f32[1,64], index: 10, kind: input, shape index: {}]
  %s11 = inlined_call_operand.vmem [shape: f32[64,32], index: 11, kind: input, shape index: {}]
  %s12 = inlined_call_operand.vmem [shape: f32[1,32], index: 12, kind: input, shape index: {}]
  %s13 = inlined_call_operand.vmem [shape: f32[32,10], index: 13, kind: input, shape index: {}]
  %s14 = inlined_call_operand.vmem [shape: f32[1,10], index: 14, kind: input, shape index: {}]
  %s15 = inlined_call_operand.hbm [shape: f32[2,10], index: 15, kind: output, shape index: {}]
  %s16 = sld [smem:[#allocation0]]
  $region78: #{net_forward.1} parent=0
    _
  %s18 = ssub.s32 1, %s16
  %s19 = scalar_select 0, %s18, %s16
  $region1: #{net_forward.1} parent=0
    #allocation4 [shape = 'u8[98304]{0}', space=vmem, size = 0x18000, scoped, tag = 'input window, operand 6, single buffered']
    #allocation5 [shape = 's32[1]{0}', space=sflag, size = 0x4, scoped, tag = 'scoped memory for net_forward.1']
    #allocation6 [shape = 's32[1]{0}', space=sflag, size = 0x4, scoped, tag = 'scoped memory for net_forward.1']
    #allocation7 [shape = 'u8[98304]{0}', space=vmem, size = 0x18000, scoped, tag = 'input window, operand 7, single buffered']
    #allocation8 [shape = 's32[1]{0}', space=sflag, size = 0x4, scoped, tag = 'scoped memory for net_forward.1']
    #allocation9 [shape = 'u8[1024]{0}', space=vmem, size = 0x400, scoped, tag = 'output window, operand 0, single buffered']
    %20 = vsyncpa [#allocation5], 0
    %21 = vsyncpa [#allocation8], 0
    %22 = vsyncpa [#allocation6], 0
    // Predicated region
    $region2: #{net_forward.1} parent=1 // pred_check
      _
    $region3: #{net_forward.1} parent=1 // pred_check_branch
      %24 = sbr.rel (0) target = $region5
    $region4: #{net_forward.1} parent=1 // pred_region
      _
    $region5: #{net_forward.1} parent=1 // pred_fallthru
      _
    // Predicated region
    $region6: #{net_forward.1} parent=1 // pred_check
      _
    $region7: #{net_forward.1} parent=1 // pred_check_branch
      %26 = sbr.rel (0) target = $region9
    $region8: #{net_forward.1} parent=1 // pred_region
      _
    $region9: #{net_forward.1} parent=1 // pred_fallthru
      _
    // Predicated region
    $region10: #{net_forward.1} parent=1 // pred_check
      _
    $region11: #{net_forward.1} parent=1 // pred_check_branch
      %28 = sbr.rel (0) target = $region13
    $region12: #{net_forward.1} parent=1 // pred_region
      _
    $region13: #{net_forward.1} parent=1 // pred_fallthru
      _
    // Predicated region
    $region14: #{net_forward.1} parent=1 // pred_check
      _
    $region15: #{net_forward.1} parent=1 // pred_check_branch
      %30 = sbr.rel (0) target = $region17
    $region16: #{net_forward.1} parent=1 // pred_region
      _
    $region17: #{net_forward.1} parent=1 // pred_fallthru
      _
    // Predicated region
    $region18: #{net_forward.1} parent=1 // pred_check
      _
    $region19: #{net_forward.1} parent=1 // pred_check_branch
      %32 = sbr.rel (0) target = $region21
    $region20: #{net_forward.1} parent=1 // pred_region
      _
    $region21: #{net_forward.1} parent=1 // pred_fallthru
      _
    // Predicated region
    $region22: #{net_forward.1} parent=1 // pred_check
      _
    $region23: #{net_forward.1} parent=1 // pred_check_branch
      %34 = sbr.rel (0) target = $region25
    $region24: #{net_forward.1} parent=1 // pred_region
      _
    $region25: #{net_forward.1} parent=1 // pred_fallthru
      _
    // Predicated region
    $region26: #{net_forward.1} parent=1 // pred_check
      _
    $region27: #{net_forward.1} parent=1 // pred_check_branch
      %36 = sbr.rel (0) target = $region29
    $region28: #{net_forward.1} parent=1 // pred_region
      %s38 = ssub.s32 3072, 3072
      %39 = vsyncadd [#allocation5], %s38
      %s40 = sshll.u32 [#allocation4], 4
      %s41 = int_to_ptr.vmem [resolvable:$true] %s40
      %46 = dma.hbm_to_vmem [thread:$0]  %s6, 3072, %s41, [#allocation5], 128, 128, 8
    $region29: #{net_forward.1} parent=1 // pred_fallthru
      _
    // Predicated region
    $region30: #{net_forward.1} parent=1 // pred_check
      _
    $region31: #{net_forward.1} parent=1 // pred_check_branch
      %48 = sbr.rel (0) target = $region33
    $region32: #{net_forward.1} parent=1 // pred_region
      %s50 = ssub.s32 3072, 3072
      %51 = vsyncadd [#allocation8], %s50
      %s52 = sshll.u32 [#allocation7], 4
      %s53 = int_to_ptr.vmem [resolvable:$true] %s52
      %58 = dma.hbm_to_vmem [thread:$0]  %s7, 3072, %s53, [#allocation8], 128, 128, 8
    $region33: #{net_forward.1} parent=1 // pred_fallthru
      _
    // Predicated region
    $region34: #{net_forward.1} parent=1 // pred_check
      _
    $region35: #{net_forward.1} parent=1 // pred_check_branch
      %60 = sbr.rel (0) target = $region37
    $region36: #{net_forward.1} parent=1 // pred_region
      _
    $region37: #{net_forward.1} parent=1 // pred_fallthru
      _
    // Predicated region
    $region38: #{net_forward.1} parent=1 // pred_check
      _
    $region39: #{net_forward.1} parent=1 // pred_check_branch
      %62 = sbr.rel (0) target = $region41
    $region40: #{net_forward.1} parent=1 // pred_region
      _
    $region41: #{net_forward.1} parent=1 // pred_fallthru
      _
    // Predicated region
    $region42: #{net_forward.1} parent=1 // pred_check
      _
    $region43: #{net_forward.1} parent=1 // pred_check_branch
      %64 = sbr.rel (0) target = $region45
    $region44: #{net_forward.1} parent=1 // pred_region
      _
    $region45: #{net_forward.1} parent=1 // pred_fallthru
      _
    // Predicated region
    $region46: #{net_forward.1} parent=1 // pred_check
      _
    $region47: #{net_forward.1} parent=1 // pred_check_branch
      %66 = sbr.rel (0) target = $region49
    $region48: #{net_forward.1} parent=1 // pred_region
      _
    $region49: #{net_forward.1} parent=1 // pred_fallthru
      _
    // Predicated region
    $region50: #{net_forward.1} parent=1 // pred_check
      _
    $region51: #{net_forward.1} parent=1 // pred_check_branch
      %68 = sbr.rel (0) target = $region53
    $region52: #{net_forward.1} parent=1 // pred_region
      _
    $region53: #{net_forward.1} parent=1 // pred_fallthru
      _
    // Predicated region
    $region54: #{net_forward.1} parent=1 // pred_check
      _
    $region55: #{net_forward.1} parent=1 // pred_check_branch
      %70 = sbr.rel (0) target = $region57
    $region56: #{net_forward.1} parent=1 // pred_region
      _
    $region57: #{net_forward.1} parent=1 // pred_fallthru
      _
    // Predicated region
    $region58: #{net_forward.1} parent=1 // pred_check
      _
    $region59: #{net_forward.1} parent=1 // pred_check_branch
      %72 = sbr.rel (0) target = $region61
    $region60: #{net_forward.1} parent=1 // pred_region
      _
    $region61: #{net_forward.1} parent=1 // pred_fallthru
      _
    // Predicated region
    $region62: #{net_forward.1} parent=1 // pred_check
      _
    $region63: #{net_forward.1} parent=1 // pred_check_branch
      %74 = sbr.rel (0) target = $region65
    $region64: #{net_forward.1} parent=1 // pred_region
      %75 = dma.done [#allocation5], 3072
    $region65: #{net_forward.1} parent=1 // pred_fallthru
      _
    // Predicated region
    $region66: #{net_forward.1} parent=1 // pred_check
      _
    $region67: #{net_forward.1} parent=1 // pred_check_branch
      %77 = sbr.rel (0) target = $region69
    $region68: #{net_forward.1} parent=1 // pred_region
      %78 = dma.done [#allocation8], 3072
    $region69: #{net_forward.1} parent=1 // pred_fallthru
      _
    %vm79 = vcmask 523264
    %80 = vst.msk [vmem:[#allocation2] sm:$0xff] %vm79, 0.0
    %81 = vst.msk [vmem:[#allocation2 + $0x20] sm:$0xff] %vm79, 0.0
    %82 = vst.msk [vmem:[#allocation2 + $0x18] sm:$0xff] %vm79, 0.0
    %83 = vst.msk [vmem:[#allocation2 + $0x38] sm:$0xff] %vm79, 0.0
    %v84 = vld [vmem:[%s0] sm:$0xff]
    %v85 = vld [vmem:[%s0 + $0x8] sm:$0xff]
    %v86 = vld [vmem:[%s0 + $0x10] sm:$0xff]
    %v87 = vld [vmem:[%s0 + $0x18] sm:$0xff]
    %88 = vst.msk [vmem:[#allocation2 + $0x8] sm:$0xff] %vm79, %v84
    %89 = vst.msk [vmem:[#allocation2 + $0x10] sm:$0xff] %vm79, %v85
    %90 = vst.msk [vmem:[#allocation2 + $0x28] sm:$0xff] %vm79, %v86
    %91 = vst.msk [vmem:[#allocation2 + $0x30] sm:$0xff] %vm79, %v87
    %v92 = vld [vmem:[#allocation2 + $0x7] sm:$0xff]
    %v93 = vld [vmem:[#allocation2 + $0xf] sm:$0xff]
    %v94 = vld [vmem:[#allocation2 + $0x27] sm:$0xff]
    %v95 = vld [vmem:[#allocation2 + $0x2f] sm:$0xff]
    %v96 = vld [vmem:[%s1] sm:$0xff]
    %v97 = vld [vmem:[%s1 + $0x8] sm:$0xff]
    %v98 = vld [vmem:[%s1 + $0x10] sm:$0xff]
    %v99 = vld [vmem:[%s1 + $0x18] sm:$0xff]
    %v100 = vld [vmem:[%s1 + $0x20] sm:$0xff]
    %v101 = vld [vmem:[%s1 + $0x28] sm:$0xff]
    %v102 = vld [vmem:[%s1 + $0x30] sm:$0xff]
    %v103 = vld [vmem:[%s1 + $0x38] sm:$0xff]
    %v104 = vld [vmem:[%s2] sm:$0xff]
    %v105 = vld [vmem:[%s2 + $0x8] sm:$0xff]
    %v106 = vld [vmem:[%s2 + $0x10] sm:$0xff]
    %v107 = vld [vmem:[%s2 + $0x18] sm:$0xff]
    %v108 = vld [vmem:[%s2 + $0x20] sm:$0xff]
    %v109 = vld [vmem:[%s2 + $0x28] sm:$0xff]
    %v110 = vld [vmem:[%s2 + $0x30] sm:$0xff]
    %v111 = vld [vmem:[%s2 + $0x38] sm:$0xff]
    %v112 = vld [vmem:[#allocation2 + $0x8] sm:$0xff]
    %v113 = vld [vmem:[#allocation2 + $0x10] sm:$0xff]
    %v114 = vld [vmem:[#allocation2 + $0x28] sm:$0xff]
    %v115 = vld [vmem:[#allocation2 + $0x30] sm:$0xff]
    %s116 = scalar_lea.vmem %s1, 64
    %v117 = vld [vmem:[%s116] sm:$0xff]
    %v118 = vld [vmem:[%s116 + $0x8] sm:$0xff]
    %v119 = vld [vmem:[%s116 + $0x10] sm:$0xff]
    %v120 = vld [vmem:[%s116 + $0x18] sm:$0xff]
    %v121 = vld [vmem:[%s116 + $0x20] sm:$0xff]
    %v122 = vld [vmem:[%s116 + $0x28] sm:$0xff]
    %v123 = vld [vmem:[%s116 + $0x30] sm:$0xff]
    %v124 = vld [vmem:[%s116 + $0x38] sm:$0xff]
    %v126 = vsel %vm79, %v112, 0
    %v129 = vsel %vm79, %v113, 0
    %v132 = vsel %vm79, %v114, 0
    %v135 = vsel %vm79, %v115, 0
    %137 = vmatprep.subr.mxu0 0.0
    %138 = vmatpush1.msra.mxu0 %v117
    %139 = vmatprep.subr.mxu0 0.0
    %140 = vmatpush1.msra.mxu0 %v118
    %141 = vmatprep.subr.mxu0 0.0
    %142 = vmatpush1.msra.mxu0 %v119
    %143 = vmatprep.subr.mxu0 0.0
    %144 = vmatpush1.msra.mxu0 %v120
    %145 = vmatprep.subr.mxu0 0.0
    %146 = vmatpush1.msra.mxu0 %v121
    %147 = vmatprep.subr.mxu0 0.0
    %148 = vmatpush1.msra.mxu0 %v122
    %149 = vmatprep.subr.mxu0 0.0
    %150 = vmatpush1.msra.mxu0 %v123
    %151 = vmatprep.subr.mxu0 0.0
    %152 = vmatpush1.msra.mxu0 %v124
    %153 = vmatprep.subr.mxu0 0.0
    %154 = vmatpush1.msra.mxu0 0.0
    %155 = vmatprep.subr.mxu0 0.0
    %156 = vmatpush1.msra.mxu0 0.0
    %157 = vmatprep.subr.mxu0 0.0
    %158 = vmatpush1.msra.mxu0 0.0
    %159 = vmatprep.subr.mxu0 0.0
    %160 = vmatpush1.msra.mxu0 0.0
    %161 = vmatprep.subr.mxu0 0.0
    %162 = vmatpush1.msra.mxu0 0.0
    %163 = vmatprep.subr.mxu0 0.0
    %164 = vmatpush1.msra.mxu0 0.0
    %165 = vmatprep.subr.mxu0 0.0
    %166 = vmatpush1.msra.mxu0 0.0
    %167 = vmatprep.subr.mxu0 0.0
    %168 = vmatpush1.msra.mxu0 0.0
    %169 = vmatprep.subr.mxu0 0.0
    %170 = vmatpush1.msra.mxu0 0.0
    %171 = vmatprep.subr.mxu0 0.0
    %172 = vmatpush1.msra.mxu0 0.0
    %173 = vmatprep.subr.mxu0 0.0
    %174 = vmatpush1.msra.mxu0 0.0
    %175 = vmatprep.subr.mxu0 0.0
    %176 = vmatpush1.msra.mxu0 0.0
    %177 = vmatprep.subr.mxu0 0.0
    %178 = vmatpush1.msra.mxu0 0.0
    %179 = vmatprep.subr.mxu0 0.0
    %180 = vmatpush1.msra.mxu0 0.0
    %181 = vmatprep.subr.mxu0 0.0
    %182 = vmatpush1.msra.mxu0 0.0
    %183 = vmatprep.subr.mxu0 0.0
    %184 = vmatpush1.msra.mxu0 0.0
    %185 = vmatprep.subr.mxu0 0.0
    %186 = vmatpush1.msra.mxu0 0.0
    %187 = vmatprep.subr.mxu0 0.0
    %188 = vmatpush1.msra.mxu0 0.0
    %189 = vmatprep.subr.mxu0 0.0
    %190 = vmatpush1.msra.mxu0 0.0
    %191 = vmatprep.subr.mxu0 0.0
    %192 = vmatpush1.msra.mxu0 0.0
    %193 = vmatprep.subr.mxu0 0.0
    %194 = vmatpush1.msra.mxu0 0.0
    %195 = vmatprep.subr.mxu0 0.0
    %196 = vmatpush1.msra.mxu0 0.0
    %197 = vmatprep.subr.mxu0 0.0
    %198 = vmatpush1.msra.mxu0 0.0
    %199 = vmatprep.subr.mxu0 0.0
    %200 = vmatpush1.msra.mxu0 0.0
    %201 = vmatprep.mubr.f32.mxu0 0.0
    %202 = vmatmul.mubr.f32.gmra.mrb[0].mxu0 %v126
    %v203 = vpop.f32.mrb[0].mxu0
    %v204 = vadd.f32 0.0, %v203
    %v205 = vpop.f32.mrb[0].mxu0
    %206 = vmatprep.mubr.f32.mxu0 0.0
    %207 = vmatmul.mubr.f32.gmra.mrb[0].mxu0 %v129
    %v208 = vpop.f32.mrb[0].mxu0
    %v209 = vadd.f32 0.0, %v208
    %v210 = vpop.f32.mrb[0].mxu0
    %211 = vmatprep.mubr.f32.mxu0 0.0
    %212 = vmatmul.mubr.f32.gmra.mrb[0].mxu0 %v132
    %v213 = vpop.f32.mrb[0].mxu0
    %v214 = vadd.f32 0.0, %v213
    %v215 = vpop.f32.mrb[0].mxu0
    %216 = vmatprep.mubr.f32.mxu0 0.0
    %217 = vmatmul.mubr.f32.gmra.mrb[0].mxu0 %v135
    %v218 = vpop.f32.mrb[0].mxu0
    %v219 = vadd.f32 0.0, %v218
    %v220 = vpop.f32.mrb[0].mxu0
    %221 = vdwg.mxu0
    %v223 = vsel %vm79, %v92, 0
    %v226 = vsel %vm79, %v93, 0
    %v229 = vsel %vm79, %v94, 0
    %v232 = vsel %vm79, %v95, 0
    %234 = vmatprep.subr.mxu0 0.0
    %235 = vmatpush1.msra.mxu0 %v96
    %236 = vmatprep.subr.mxu0 0.0
    %237 = vmatpush1.msra.mxu0 %v97
    %238 = vmatprep.subr.mxu0 0.0
    %239 = vmatpush1.msra.mxu0 %v98
    %240 = vmatprep.subr.mxu0 0.0
    %241 = vmatpush1.msra.mxu0 %v99
    %242 = vmatprep.subr.mxu0 0.0
    %243 = vmatpush1.msra.mxu0 %v100
    %244 = vmatprep.subr.mxu0 0.0
    %245 = vmatpush1.msra.mxu0 %v101
    %246 = vmatprep.subr.mxu0 0.0
    %247 = vmatpush1.msra.mxu0 %v102
    %248 = vmatprep.subr.mxu0 0.0
    %249 = vmatpush1.msra.mxu0 %v103
    %250 = vmatprep.subr.mxu0 0.0
    %251 = vmatpush1.msra.mxu0 0.0
    %252 = vmatprep.subr.mxu0 0.0
    %253 = vmatpush1.msra.mxu0 0.0
    %254 = vmatprep.subr.mxu0 0.0
    %255 = vmatpush1.msra.mxu0 0.0
    %256 = vmatprep.subr.mxu0 0.0
    %257 = vmatpush1.msra.mxu0 0.0
    %258 = vmatprep.subr.mxu0 0.0
    %259 = vmatpush1.msra.mxu0 0.0
    %260 = vmatprep.subr.mxu0 0.0
    %261 = vmatpush1.msra.mxu0 0.0
    %262 = vmatprep.subr.mxu0 0.0
    %263 = vmatpush1.msra.mxu0 0.0
    %264 = vmatprep.subr.mxu0 0.0
    %265 = vmatpush1.msra.mxu0 0.0
    %266 = vmatprep.subr.mxu0 0.0
    %267 = vmatpush1.msra.mxu0 0.0
    %268 = vmatprep.subr.mxu0 0.0
    %269 = vmatpush1.msra.mxu0 0.0
    %270 = vmatprep.subr.mxu0 0.0
    %271 = vmatpush1.msra.mxu0 0.0
    %272 = vmatprep.subr.mxu0 0.0
    %273 = vmatpush1.msra.mxu0 0.0
    %274 = vmatprep.subr.mxu0 0.0
    %275 = vmatpush1.msra.mxu0 0.0
    %276 = vmatprep.subr.mxu0 0.0
    %277 = vmatpush1.msra.mxu0 0.0
    %278 = vmatprep.subr.mxu0 0.0
    %279 = vmatpush1.msra.mxu0 0.0
    %280 = vmatprep.subr.mxu0 0.0
    %281 = vmatpush1.msra.mxu0 0.0
    %282 = vmatprep.subr.mxu0 0.0
    %283 = vmatpush1.msra.mxu0 0.0
    %284 = vmatprep.subr.mxu0 0.0
    %285 = vmatpush1.msra.mxu0 0.0
    %286 = vmatprep.subr.mxu0 0.0
    %287 = vmatpush1.msra.mxu0 0.0
    %288 = vmatprep.subr.mxu0 0.0
    %289 = vmatpush1.msra.mxu0 0.0
    %290 = vmatprep.subr.mxu0 0.0
    %291 = vmatpush1.msra.mxu0 0.0
    %292 = vmatprep.subr.mxu0 0.0
    %293 = vmatpush1.msra.mxu0 0.0
    %294 = vmatprep.subr.mxu0 0.0
    %295 = vmatpush1.msra.mxu0 0.0
    %296 = vmatprep.subr.mxu0 0.0
    %297 = vmatpush1.msra.mxu0 0.0
    %298 = vmatprep.mubr.f32.mxu0 0.0
    %299 = vmatmul.mubr.f32.gmra.mrb[0].mxu0 %v223
    %v300 = vpop.f32.mrb[0].mxu0
    %v301 = vadd.f32 %v204, %v300
    %v302 = vpop.f32.mrb[0].mxu0
    %303 = vmatprep.mubr.f32.mxu0 0.0
    %304 = vmatmul.mubr.f32.gmra.mrb[0].mxu0 %v226
    %v305 = vpop.f32.mrb[0].mxu0
    %v306 = vadd.f32 %v209, %v305
    %v307 = vpop.f32.mrb[0].mxu0
    %308 = vmatprep.mubr.f32.mxu0 0.0
    %309 = vmatmul.mubr.f32.gmra.mrb[0].mxu0 %v229
    %v310 = vpop.f32.mrb[0].mxu0
    %v311 = vadd.f32 %v214, %v310
    %v312 = vpop.f32.mrb[0].mxu0
    %313 = vmatprep.mubr.f32.mxu0 0.0
    %314 = vmatmul.mubr.f32.gmra.mrb[0].mxu0 %v232
    %v315 = vpop.f32.mrb[0].mxu0
    %v316 = vadd.f32 %v219, %v315
    %v317 = vpop.f32.mrb[0].mxu0
    %318 = vdwg.mxu0
    %s319 = scalar_lea.vmem %s2, 64
    %v320 = vld [vmem:[%s319] sm:$0xff]
    %v321 = vld [vmem:[%s319 + $0x8] sm:$0xff]
    %v322 = vld [vmem:[%s319 + $0x10] sm:$0xff]
    %v323 = vld [vmem:[%s319 + $0x18] sm:$0xff]
    %v324 = vld [vmem:[%s319 + $0x20] sm:$0xff]
    %v325 = vld [vmem:[%s319 + $0x28] sm:$0xff]
    %v326 = vld [vmem:[%s319 + $0x30] sm:$0xff]
    %v327 = vld [vmem:[%s319 + $0x38] sm:$0xff]
    %328 = vmatprep.subr.mxu0 0.0
    %329 = vmatpush1.msra.mxu0 %v320
    %330 = vmatprep.subr.mxu0 0.0
    %331 = vmatpush1.msra.mxu0 %v321
    %332 = vmatprep.subr.mxu0 0.0
    %333 = vmatpush1.msra.mxu0 %v322
    %334 = vmatprep.subr.mxu0 0.0
    %335 = vmatpush1.msra.mxu0 %v323
    %336 = vmatprep.subr.mxu0 0.0
    %337 = vmatpush1.msra.mxu0 %v324
    %338 = vmatprep.subr.mxu0 0.0
    %339 = vmatpush1.msra.mxu0 %v325
    %340 = vmatprep.subr.mxu0 0.0
    %341 = vmatpush1.msra.mxu0 %v326
    %342 = vmatprep.subr.mxu0 0.0
    %343 = vmatpush1.msra.mxu0 %v327
    %344 = vmatprep.subr.mxu0 0.0
    %345 = vmatpush1.msra.mxu0 0.0
    %346 = vmatprep.subr.mxu0 0.0
    %347 = vmatpush1.msra.mxu0 0.0
    %348 = vmatprep.subr.mxu0 0.0
    %349 = vmatpush1.msra.mxu0 0.0
    %350 = vmatprep.subr.mxu0 0.0
    %351 = vmatpush1.msra.mxu0 0.0
    %352 = vmatprep.subr.mxu0 0.0
    %353 = vmatpush1.msra.mxu0 0.0
    %354 = vmatprep.subr.mxu0 0.0
    %355 = vmatpush1.msra.mxu0 0.0
    %356 = vmatprep.subr.mxu0 0.0
    %357 = vmatpush1.msra.mxu0 0.0
    %358 = vmatprep.subr.mxu0 0.0
    %359 = vmatpush1.msra.mxu0 0.0
    %360 = vmatprep.subr.mxu0 0.0
    %361 = vmatpush1.msra.mxu0 0.0
    %362 = vmatprep.subr.mxu0 0.0
    %363 = vmatpush1.msra.mxu0 0.0
    %364 = vmatprep.subr.mxu0 0.0
    %365 = vmatpush1.msra.mxu0 0.0
    %366 = vmatprep.subr.mxu0 0.0
    %367 = vmatpush1.msra.mxu0 0.0
    %368 = vmatprep.subr.mxu0 0.0
    %369 = vmatpush1.msra.mxu0 0.0
    %370 = vmatprep.subr.mxu0 0.0
    %371 = vmatpush1.msra.mxu0 0.0
    %372 = vmatprep.subr.mxu0 0.0
    %373 = vmatpush1.msra.mxu0 0.0
    %374 = vmatprep.subr.mxu0 0.0
    %375 = vmatpush1.msra.mxu0 0.0
    %376 = vmatprep.subr.mxu0 0.0
    %377 = vmatpush1.msra.mxu0 0.0
    %378 = vmatprep.subr.mxu0 0.0
    %379 = vmatpush1.msra.mxu0 0.0
    %380 = vmatprep.subr.mxu0 0.0
    %381 = vmatpush1.msra.mxu0 0.0
    %382 = vmatprep.subr.mxu0 0.0
    %383 = vmatpush1.msra.mxu0 0.0
    %384 = vmatprep.subr.mxu0 0.0
    %385 = vmatpush1.msra.mxu0 0.0
    %386 = vmatprep.subr.mxu0 0.0
    %387 = vmatpush1.msra.mxu0 0.0
    %388 = vmatprep.subr.mxu0 0.0
    %389 = vmatpush1.msra.mxu0 0.0
    %390 = vmatprep.subr.mxu0 0.0
    %391 = vmatpush1.msra.mxu0 0.0
    %392 = vmatprep.mubr.f32.mxu0 0.0
    %393 = vmatmul.mubr.f32.gmra.mrb[0].mxu0 %v126
    %v394 = vpop.f32.mrb[0].mxu0
    %v395 = vadd.f32 0.0, %v394
    %v396 = vpop.f32.mrb[0].mxu0
    %397 = vmatprep.mubr.f32.mxu0 0.0
    %398 = vmatmul.mubr.f32.gmra.mrb[0].mxu0 %v129
    %v399 = vpop.f32.mrb[0].mxu0
    %v400 = vadd.f32 0.0, %v399
    %v401 = vpop.f32.mrb[0].mxu0
    %402 = vmatprep.mubr.f32.mxu0 0.0
    %403 = vmatmul.mubr.f32.gmra.mrb[0].mxu0 %v132
    %v404 = vpop.f32.mrb[0].mxu0
    %v405 = vadd.f32 0.0, %v404
    %v406 = vpop.f32.mrb[0].mxu0
    %407 = vmatprep.mubr.f32.mxu0 0.0
    %408 = vmatmul.mubr.f32.gmra.mrb[0].mxu0 %v135
    %v409 = vpop.f32.mrb[0].mxu0
    %v410 = vadd.f32 0.0, %v409
    %v411 = vpop.f32.mrb[0].mxu0
    %412 = vdwg.mxu0
    %413 = vmatprep.subr.mxu0 0.0
    %414 = vmatpush1.msra.mxu0 %v104
    %415 = vmatprep.subr.mxu0 0.0
    %416 = vmatpush1.msra.mxu0 %v105
    %417 = vmatprep.subr.mxu0 0.0
    %418 = vmatpush1.msra.mxu0 %v106
    %419 = vmatprep.subr.mxu0 0.0
    %420 = vmatpush1.msra.mxu0 %v107
    %421 = vmatprep.subr.mxu0 0.0
    %422 = vmatpush1.msra.mxu0 %v108
    %423 = vmatprep.subr.mxu0 0.0
    %424 = vmatpush1.msra.mxu0 %v109
    %425 = vmatprep.subr.mxu0 0.0
    %426 = vmatpush1.msra.mxu0 %v110
    %427 = vmatprep.subr.mxu0 0.0
    %428 = vmatpush1.msra.mxu0 %v111
    %429 = vmatprep.subr.mxu0 0.0
    %430 = vmatpush1.msra.mxu0 0.0
    %431 = vmatprep.subr.mxu0 0.0
    %432 = vmatpush1.msra.mxu0 0.0
    %433 = vmatprep.subr.mxu0 0.0
    %434 = vmatpush1.msra.mxu0 0.0
    %435 = vmatprep.subr.mxu0 0.0
    %436 = vmatpush1.msra.mxu0 0.0
    %437 = vmatprep.subr.mxu0 0.0
    %438 = vmatpush1.msra.mxu0 0.0
    %439 = vmatprep.subr.mxu0 0.0
    %440 = vmatpush1.msra.mxu0 0.0
    %441 = vmatprep.subr.mxu0 0.0
    %442 = vmatpush1.msra.mxu0 0.0
    %443 = vmatprep.subr.mxu0 0.0
    %444 = vmatpush1.msra.mxu0 0.0
    %445 = vmatprep.subr.mxu0 0.0
    %446 = vmatpush1.msra.mxu0 0.0
    %447 = vmatprep.subr.mxu0 0.0
    %448 = vmatpush1.msra.mxu0 0.0
    %449 = vmatprep.subr.mxu0 0.0
    %450 = vmatpush1.msra.mxu0 0.0
    %451 = vmatprep.subr.mxu0 0.0
    %452 = vmatpush1.msra.mxu0 0.0
    %453 = vmatprep.subr.mxu0 0.0
    %454 = vmatpush1.msra.mxu0 0.0
    %455 = vmatprep.subr.mxu0 0.0
    %456 = vmatpush1.msra.mxu0 0.0
    %457 = vmatprep.subr.mxu0 0.0
    %458 = vmatpush1.msra.mxu0 0.0
    %459 = vmatprep.subr.mxu0 0.0
    %460 = vmatpush1.msra.mxu0 0.0
    %461 = vmatprep.subr.mxu0 0.0
    %462 = vmatpush1.msra.mxu0 0.0
    %463 = vmatprep.subr.mxu0 0.0
    %464 = vmatpush1.msra.mxu0 0.0
    %465 = vmatprep.subr.mxu0 0.0
    %466 = vmatpush1.msra.mxu0 0.0
    %467 = vmatprep.subr.mxu0 0.0
    %468 = vmatpush1.msra.mxu0 0.0
    %469 = vmatprep.subr.mxu0 0.0
    %470 = vmatpush1.msra.mxu0 0.0
    %471 = vmatprep.subr.mxu0 0.0
    %472 = vmatpush1.msra.mxu0 0.0
    %473 = vmatprep.subr.mxu0 0.0
    %474 = vmatpush1.msra.mxu0 0.0
    %475 = vmatprep.subr.mxu0 0.0
    %476 = vmatpush1.msra.mxu0 0.0
    %477 = vmatprep.mubr.f32.mxu0 0.0
    %478 = vmatmul.mubr.f32.gmra.mrb[0].mxu0 %v223
    %v479 = vpop.f32.mrb[0].mxu0
    %v480 = vadd.f32 %v395, %v479
    %v481 = vpop.f32.mrb[0].mxu0
    %482 = vmatprep.mubr.f32.mxu0 0.0
    %483 = vmatmul.mubr.f32.gmra.mrb[0].mxu0 %v226
    %v484 = vpop.f32.mrb[0].mxu0
    %v485 = vadd.f32 %v400, %v484
    %v486 = vpop.f32.mrb[0].mxu0
    %487 = vmatprep.mubr.f32.mxu0 0.0
    %488 = vmatmul.mubr.f32.gmra.mrb[0].mxu0 %v229
    %v489 = vpop.f32.mrb[0].mxu0
    %v490 = vadd.f32 %v405, %v489
    %v491 = vpop.f32.mrb[0].mxu0
    %492 = vmatprep.mubr.f32.mxu0 0.0
    %493 = vmatmul.mubr.f32.gmra.mrb[0].mxu0 %v232
    %v494 = vpop.f32.mrb[0].mxu0
    %v495 = vadd.f32 %v410, %v494
    %v496 = vpop.f32.mrb[0].mxu0
    %497 = vdwg.mxu0
    %v498 = vld [vmem:[#allocation2 + $0x9] sm:$0xff]
    %v499 = vld [vmem:[#allocation2 + $0x11] sm:$0xff]
    %v500 = vld [vmem:[#allocation2 + $0x29] sm:$0xff]
    %v501 = vld [vmem:[#allocation2 + $0x31] sm:$0xff]
    %s502 = scalar_lea.vmem %s1, 128
    %v503 = vld [vmem:[%s502] sm:$0xff]
    %v504 = vld [vmem:[%s502 + $0x8] sm:$0xff]
    %v505 = vld [vmem:[%s502 + $0x10] sm:$0xff]
    %v506 = vld [vmem:[%s502 + $0x18] sm:$0xff]
    %v507 = vld [vmem:[%s502 + $0x20] sm:$0xff]
    %v508 = vld [vmem:[%s502 + $0x28] sm:$0xff]
    %v509 = vld [vmem:[%s502 + $0x30] sm:$0xff]
    %v510 = vld [vmem:[%s502 + $0x38] sm:$0xff]
    %v512 = vsel %vm79, %v498, 0
    %v515 = vsel %vm79, %v499, 0
    %v518 = vsel %vm79, %v500, 0
    %v521 = vsel %vm79, %v501, 0
    %523 = vmatprep.subr.mxu0 0.0
    %524 = vmatpush1.msra.mxu0 %v503
    %525 = vmatprep.subr.mxu0 0.0
    %526 = vmatpush1.msra.mxu0 %v504
    %527 = vmatprep.subr.mxu0 0.0
    %528 = vmatpush1.msra.mxu0 %v505
    %529 = vmatprep.subr.mxu0 0.0
    %530 = vmatpush1.msra.mxu0 %v506
    %531 = vmatprep.subr.mxu0 0.0
    %532 = vmatpush1.msra.mxu0 %v507
    %533 = vmatprep.subr.mxu0 0.0
    %534 = vmatpush1.msra.mxu0 %v508
    %535 = vmatprep.subr.mxu0 0.0
    %536 = vmatpush1.msra.mxu0 %v509
    %537 = vmatprep.subr.mxu0 0.0
    %538 = vmatpush1.msra.mxu0 %v510
    %539 = vmatprep.subr.mxu0 0.0
    %540 = vmatpush1.msra.mxu0 0.0
    %541 = vmatprep.subr.mxu0 0.0
    %542 = vmatpush1.msra.mxu0 0.0
    %543 = vmatprep.subr.mxu0 0.0
    %544 = vmatpush1.msra.mxu0 0.0
    %545 = vmatprep.subr.mxu0 0.0
    %546 = vmatpush1.msra.mxu0 0.0
    %547 = vmatprep.subr.mxu0 0.0
    %548 = vmatpush1.msra.mxu0 0.0
    %549 = vmatprep.subr.mxu0 0.0
    %550 = vmatpush1.msra.mxu0 0.0
    %551 = vmatprep.subr.mxu0 0.0
    %552 = vmatpush1.msra.mxu0 0.0
    %553 = vmatprep.subr.mxu0 0.0
    %554 = vmatpush1.msra.mxu0 0.0
    %555 = vmatprep.subr.mxu0 0.0
    %556 = vmatpush1.msra.mxu0 0.0
    %557 = vmatprep.subr.mxu0 0.0
    %558 = vmatpush1.msra.mxu0 0.0
    %559 = vmatprep.subr.mxu0 0.0
    %560 = vmatpush1.msra.mxu0 0.0
    %561 = vmatprep.subr.mxu0 0.0
    %562 = vmatpush1.msra.mxu0 0.0
    %563 = vmatprep.subr.mxu0 0.0
    %564 = vmatpush1.msra.mxu0 0.0
    %565 = vmatprep.subr.mxu0 0.0
    %566 = vmatpush1.msra.mxu0 0.0
    %567 = vmatprep.subr.mxu0 0.0
    %568 = vmatpush1.msra.mxu0 0.0
    %569 = vmatprep.subr.mxu0 0.0
    %570 = vmatpush1.msra.mxu0 0.0
    %571 = vmatprep.subr.mxu0 0.0
    %572 = vmatpush1.msra.mxu0 0.0
    %573 = vmatprep.subr.mxu0 0.0
    %574 = vmatpush1.msra.mxu0 0.0
    %575 = vmatprep.subr.mxu0 0.0
    %576 = vmatpush1.msra.mxu0 0.0
    %577 = vmatprep.subr.mxu0 0.0
    %578 = vmatpush1.msra.mxu0 0.0
    %579 = vmatprep.subr.mxu0 0.0
    %580 = vmatpush1.msra.mxu0 0.0
    %581 = vmatprep.subr.mxu0 0.0
    %582 = vmatpush1.msra.mxu0 0.0
    %583 = vmatprep.subr.mxu0 0.0
    %584 = vmatpush1.msra.mxu0 0.0
    %585 = vmatprep.subr.mxu0 0.0
    %586 = vmatpush1.msra.mxu0 0.0
    %587 = vmatprep.mubr.f32.mxu0 0.0
    %588 = vmatmul.mubr.f32.gmra.mrb[0].mxu0 %v512
    %v589 = vpop.f32.mrb[0].mxu0
    %v590 = vadd.f32 0.0, %v589
    %v591 = vpop.f32.mrb[0].mxu0
    %592 = vmatprep.mubr.f32.mxu0 0.0
    %593 = vmatmul.mubr.f32.gmra.mrb[0].mxu0 %v515
    %v594 = vpop.f32.mrb[0].mxu0
    %v595 = vadd.f32 0.0, %v594
    %v596 = vpop.f32.mrb[0].mxu0
    %597 = vmatprep.mubr.f32.mxu0 0.0
    %598 = vmatmul.mubr.f32.gmra.mrb[0].mxu0 %v518
    %v599 = vpop.f32.mrb[0].mxu0
    %v600 = vadd.f32 0.0, %v599
    %v601 = vpop.f32.mrb[0].mxu0
    %602 = vmatprep.mubr.f32.mxu0 0.0
    %603 = vmatmul.mubr.f32.gmra.mrb[0].mxu0 %v521
    %v604 = vpop.f32.mrb[0].mxu0
    %v605 = vadd.f32 0.0, %v604
    %v606 = vpop.f32.mrb[0].mxu0
    %607 = vdwg.mxu0
    %v608 = vadd.f32 %v301, %v590
    %v609 = vadd.f32 %v306, %v595
    %v610 = vadd.f32 %v311, %v600
    %v611 = vadd.f32 %v316, %v605
    %s612 = scalar_lea.vmem %s2, 128
    %v613 = vld [vmem:[%s612] sm:$0xff]
    %v614 = vld [vmem:[%s612 + $0x8] sm:$0xff]
    %v615 = vld [vmem:[%s612 + $0x10] sm:$0xff]
    %v616 = vld [vmem:[%s612 + $0x18] sm:$0xff]
    %v617 = vld [vmem:[%s612 + $0x20] sm:$0xff]
    %v618 = vld [vmem:[%s612 + $0x28] sm:$0xff]
    %v619 = vld [vmem:[%s612 + $0x30] sm:$0xff]
    %v620 = vld [vmem:[%s612 + $0x38] sm:$0xff]
    %621 = vmatprep.subr.mxu0 0.0
    %622 = vmatpush1.msra.mxu0 %v613
    %623 = vmatprep.subr.mxu0 0.0
    %624 = vmatpush1.msra.mxu0 %v614
    %625 = vmatprep.subr.mxu0 0.0
    %626 = vmatpush1.msra.mxu0 %v615
    %627 = vmatprep.subr.mxu0 0.0
    %628 = vmatpush1.msra.mxu0 %v616
    %629 = vmatprep.subr.mxu0 0.0
    %630 = vmatpush1.msra.mxu0 %v617
    %631 = vmatprep.subr.mxu0 0.0
    %632 = vmatpush1.msra.mxu0 %v618
    %633 = vmatprep.subr.mxu0 0.0
    %634 = vmatpush1.msra.mxu0 %v619
    %635 = vmatprep.subr.mxu0 0.0
    %636 = vmatpush1.msra.mxu0 %v620
    %637 = vmatprep.subr.mxu0 0.0
    %638 = vmatpush1.msra.mxu0 0.0
    %639 = vmatprep.subr.mxu0 0.0
    %640 = vmatpush1.msra.mxu0 0.0
    %641 = vmatprep.subr.mxu0 0.0
    %642 = vmatpush1.msra.mxu0 0.0
    %643 = vmatprep.subr.mxu0 0.0
    %644 = vmatpush1.msra.mxu0 0.0
    %645 = vmatprep.subr.mxu0 0.0
    %646 = vmatpush1.msra.mxu0 0.0
    %647 = vmatprep.subr.mxu0 0.0
    %648 = vmatpush1.msra.mxu0 0.0
    %649 = vmatprep.subr.mxu0 0.0
    %650 = vmatpush1.msra.mxu0 0.0
    %651 = vmatprep.subr.mxu0 0.0
    %652 = vmatpush1.msra.mxu0 0.0
    %653 = vmatprep.subr.mxu0 0.0
    %654 = vmatpush1.msra.mxu0 0.0
    %655 = vmatprep.subr.mxu0 0.0
    %656 = vmatpush1.msra.mxu0 0.0
    %657 = vmatprep.subr.mxu0 0.0
    %658 = vmatpush1.msra.mxu0 0.0
    %659 = vmatprep.subr.mxu0 0.0
    %660 = vmatpush1.msra.mxu0 0.0
    %661 = vmatprep.subr.mxu0 0.0
    %662 = vmatpush1.msra.mxu0 0.0
    %663 = vmatprep.subr.mxu0 0.0
    %664 = vmatpush1.msra.mxu0 0.0
    %665 = vmatprep.subr.mxu0 0.0
    %666 = vmatpush1.msra.mxu0 0.0
    %667 = vmatprep.subr.mxu0 0.0
    %668 = vmatpush1.msra.mxu0 0.0
    %669 = vmatprep.subr.mxu0 0.0
    %670 = vmatpush1.msra.mxu0 0.0
    %671 = vmatprep.subr.mxu0 0.0
    %672 = vmatpush1.msra.mxu0 0.0
    %673 = vmatprep.subr.mxu0 0.0
    %674 = vmatpush1.msra.mxu0 0.0
    %675 = vmatprep.subr.mxu0 0.0
    %676 = vmatpush1.msra.mxu0 0.0
    %677 = vmatprep.subr.mxu0 0.0
    %678 = vmatpush1.msra.mxu0 0.0
    %679 = vmatprep.subr.mxu0 0.0
    %680 = vmatpush1.msra.mxu0 0.0
    %681 = vmatprep.subr.mxu0 0.0
    %682 = vmatpush1.msra.mxu0 0.0
    %683 = vmatprep.subr.mxu0 0.0
    %684 = vmatpush1.msra.mxu0 0.0
    %685 = vmatprep.mubr.f32.mxu0 0.0
    %686 = vmatmul.mubr.f32.gmra.mrb[0].mxu0 %v512
    %v687 = vpop.f32.mrb[0].mxu0
    %v688 = vadd.f32 0.0, %v687
    %v689 = vpop.f32.mrb[0].mxu0
    %690 = vmatprep.mubr.f32.mxu0 0.0
    %691 = vmatmul.mubr.f32.gmra.mrb[0].mxu0 %v515
    %v692 = vpop.f32.mrb[0].mxu0
    %v693 = vadd.f32 0.0, %v692
    %v694 = vpop.f32.mrb[0].mxu0
    %695 = vmatprep.mubr.f32.mxu0 0.0
    %696 = vmatmul.mubr.f32.gmra.mrb[0].mxu0 %v518
    %v697 = vpop.f32.mrb[0].mxu0
    %v698 = vadd.f32 0.0, %v697
    %v699 = vpop.f32.mrb[0].mxu0
    %700 = vmatprep.mubr.f32.mxu0 0.0
    %701 = vmatmul.mubr.f32.gmra.mrb[0].mxu0 %v521
    %v702 = vpop.f32.mrb[0].mxu0
    %v703 = vadd.f32 0.0, %v702
    %v704 = vpop.f32.mrb[0].mxu0
    %705 = vdwg.mxu0
    %v706 = vadd.f32 %v480, %v688
    %v707 = vadd.f32 %v485, %v693
    %v708 = vadd.f32 %v490, %v698
    %v709 = vadd.f32 %v495, %v703
    %v710 = vld [vmem:[%s3] sm:$0x1]
    %v712 = vlaneseq
    %v713 = vshrl.u32 %v712, 7
    %v714 = vsub.s32 0, %v713
    %v715 = vrot.slane %v710, %v714
    %v717 = vadd.f32 %v608, %v715
    %v718 = vadd.f32 %v609, %v715
    %v719 = vadd.f32 %v610, %v715
    %v720 = vadd.f32 %v611, %v715
    %v721 = vmax.f32 %v717, 0.0
    %v722 = vmax.f32 %v718, 0.0
    %v723 = vmax.f32 %v719, 0.0
    %v724 = vmax.f32 %v720, 0.0
    %v725 = vld [vmem:[%s4] sm:$0x1]
    %v727 = vlaneseq
    %v728 = vshrl.u32 %v727, 7
    %v729 = vsub.s32 0, %v728
    %v730 = vrot.slane %v725, %v729
    %v732 = vmul.f32 %v721, %v730
    %v733 = vmul.f32 %v722, %v730
    %v734 = vmul.f32 %v723, %v730
    %v735 = vmul.f32 %v724, %v730
    %v736 = vld [vmem:[%s5] sm:$0x1]
    %v738 = vlaneseq
    %v739 = vshrl.u32 %v738, 7
    %v740 = vsub.s32 0, %v739
    %v741 = vrot.slane %v736, %v740
    %v743 = vadd.f32 %v732, %v741
    %v744 = vadd.f32 %v733, %v741
    %v745 = vadd.f32 %v734, %v741
    %v746 = vadd.f32 %v735, %v741
    %v747 = vadd.f32 %v706, %v715
    %v748 = vadd.f32 %v707, %v715
    %v749 = vadd.f32 %v708, %v715
    %v750 = vadd.f32 %v709, %v715
    %v751 = vmax.f32 %v747, 0.0
    %v752 = vmax.f32 %v748, 0.0
    %v753 = vmax.f32 %v749, 0.0
    %v754 = vmax.f32 %v750, 0.0
    %v755 = vmul.f32 %v751, %v730
    %v756 = vmul.f32 %v752, %v730
    %v757 = vmul.f32 %v753, %v730
    %v758 = vmul.f32 %v754, %v730
    %v759 = vadd.f32 %v755, %v741
    %v760 = vadd.f32 %v756, %v741
    %v761 = vadd.f32 %v757, %v741
    %v762 = vadd.f32 %v758, %v741
    %v763 = vmax.f32 %v743, %v759
    %v764 = vmax.f32 %v744, %v760
    %v765 = vmax.f32 %v745, %v761
    %v766 = vmax.f32 %v746, %v762
    %v771 = vcombine.high %v763, %v763
    %v773 = vunpack.c.l.s4 1983009808
    %v774 = vunpack.c.0.s8 %v773
    %v775 = vlaneseq
    %v776 = vshrl.u32 %v775, 7
    %v777 = vsub.s32 %v774, %v776
    %v778 = vrot.slane %v763, %v777
    %v780 = vunpack.c.l.s4 1983009808
    %v781 = vunpack.c.0.s8 %v780
    %v782 = vlaneseq
    %v783 = vshrl.u32 %v782, 7
    %v784 = vsub.s32 %v781, %v783
    %v785 = vrot.slane %v771, %v784
    %v786 = vcombine.high %v778, %v778
    %v787 = vcombine.high %v785, %v785
    %v788 = vcombine.high %v764, %v764
    %v790 = vunpack.c.l.s4 1983009808
    %v791 = vunpack.c.0.s8 %v790
    %v792 = vlaneseq
    %v793 = vshrl.u32 %v792, 7
    %v794 = vsub.s32 %v791, %v793
    %v795 = vrot.slane %v764, %v794
    %v797 = vunpack.c.l.s4 1983009808
    %v798 = vunpack.c.0.s8 %v797
    %v799 = vlaneseq
    %v800 = vshrl.u32 %v799, 7
    %v801 = vsub.s32 %v798, %v800
    %v802 = vrot.slane %v788, %v801
    %v803 = vcombine.high %v795, %v795
    %v804 = vcombine.high %v802, %v802
    %v805 = vcombine.high %v765, %v765
    %v807 = vunpack.c.l.s4 1983009808
    %v808 = vunpack.c.0.s8 %v807
    %v809 = vlaneseq
    %v810 = vshrl.u32 %v809, 7
    %v811 = vsub.s32 %v808, %v810
    %v812 = vrot.slane %v765, %v811
    %v814 = vunpack.c.l.s4 1983009808
    %v815 = vunpack.c.0.s8 %v814
    %v816 = vlaneseq
    %v817 = vshrl.u32 %v816, 7
    %v818 = vsub.s32 %v815, %v817
    %v819 = vrot.slane %v805, %v818
    %v820 = vcombine.high %v812, %v812
    %v821 = vcombine.high %v819, %v819
    %v822 = vcombine.high %v766, %v766
    %v824 = vunpack.c.l.s4 1983009808
    %v825 = vunpack.c.0.s8 %v824
    %v826 = vlaneseq
    %v827 = vshrl.u32 %v826, 7
    %v828 = vsub.s32 %v825, %v827
    %v829 = vrot.slane %v766, %v828
    %v831 = vunpack.c.l.s4 1983009808
    %v832 = vunpack.c.0.s8 %v831
    %v833 = vlaneseq
    %v834 = vshrl.u32 %v833, 7
    %v835 = vsub.s32 %v832, %v834
    %v836 = vrot.slane %v822, %v835
    %v837 = vcombine.high %v829, %v829
    %v838 = vcombine.high %v836, %v836
    %v855 = vrot.slane %v778, 7
    %v856 = vrot.slane %v855, 2
    %v857 = vrot.slane %v786, 7
    %v858 = vrot.slane %v857, 2
    %v859 = vrot.slane %v785, 7
    %v860 = vrot.slane %v859, 2
    %v861 = vrot.slane %v787, 7
    %v862 = vrot.slane %v861, 2
    %v863 = vrot.slane %v795, 7
    %v864 = vrot.slane %v863, 2
    %v865 = vrot.slane %v803, 7
    %v866 = vrot.slane %v865, 2
    %v867 = vrot.slane %v802, 7
    %v868 = vrot.slane %v867, 2
    %v869 = vrot.slane %v804, 7
    %v870 = vrot.slane %v869, 2
    %v871 = vrot.slane %v812, 7
    %v872 = vrot.slane %v871, 2
    %v873 = vrot.slane %v820, 7
    %v874 = vrot.slane %v873, 2
    %v875 = vrot.slane %v819, 7
    %v876 = vrot.slane %v875, 2
    %v877 = vrot.slane %v821, 7
    %v878 = vrot.slane %v877, 2
    %v879 = vrot.slane %v829, 7
    %v880 = vrot.slane %v879, 2
    %v881 = vrot.slane %v837, 7
    %v882 = vrot.slane %v881, 2
    %v883 = vrot.slane %v836, 7
    %v884 = vrot.slane %v883, 2
    %v885 = vrot.slane %v838, 7
    %v886 = vrot.slane %v885, 2
    %v903 = vmax.f32 %v778, %v856
    %v904 = vmax.f32 %v786, %v858
    %v905 = vmax.f32 %v785, %v860
    %v906 = vmax.f32 %v787, %v862
    %v907 = vmax.f32 %v795, %v864
    %v908 = vmax.f32 %v803, %v866
    %v909 = vmax.f32 %v802, %v868
    %v910 = vmax.f32 %v804, %v870
    %v911 = vmax.f32 %v812, %v872
    %v912 = vmax.f32 %v820, %v874
    %v913 = vmax.f32 %v819, %v876
    %v914 = vmax.f32 %v821, %v878
    %v915 = vmax.f32 %v829, %v880
    %v916 = vmax.f32 %v837, %v882
    %v917 = vmax.f32 %v836, %v884
    %v918 = vmax.f32 %v838, %v886
    %919 = vst.msk [vmem:[#allocation3] sm:$0xff] %vm79, 0.0
    %920 = vst.msk [vmem:[#allocation3 + $0x18] sm:$0xff] %vm79, 0.0
    %921 = vst.msk [vmem:[#allocation3 + $0x10] sm:$0xff] %vm79, 0.0
    %922 = vst.msk [vmem:[#allocation3 + $0x28] sm:$0xff] %vm79, 0.0
    %v939 = vlaneseq
    %v940 = vshrl.u32 %v939, 7
    %v941 = vsub.s32 0, %v940
    %v942 = vrot.slane %v903, %v941
    %v943 = vlaneseq
    %v944 = vshrl.u32 %v943, 7
    %v945 = vsub.s32 0, %v944
    %v946 = vrot.slane %v904, %v945
    %v947 = vlaneseq
    %v948 = vshrl.u32 %v947, 7
    %v949 = vsub.s32 0, %v948
    %v950 = vrot.slane %v905, %v949
    %v951 = vlaneseq
    %v952 = vshrl.u32 %v951, 7
    %v953 = vsub.s32 0, %v952
    %v954 = vrot.slane %v906, %v953
    %v955 = vlaneseq
    %v956 = vshrl.u32 %v955, 7
    %v957 = vsub.s32 0, %v956
    %v958 = vrot.slane %v907, %v957
    %v959 = vlaneseq
    %v960 = vshrl.u32 %v959, 7
    %v961 = vsub.s32 0, %v960
    %v962 = vrot.slane %v908, %v961
    %v963 = vlaneseq
    %v964 = vshrl.u32 %v963, 7
    %v965 = vsub.s32 0, %v964
    %v966 = vrot.slane %v909, %v965
    %v967 = vlaneseq
    %v968 = vshrl.u32 %v967, 7
    %v969 = vsub.s32 0, %v968
    %v970 = vrot.slane %v910, %v969
    %v971 = vlaneseq
    %v972 = vshrl.u32 %v971, 7
    %v973 = vsub.s32 0, %v972
    %v974 = vrot.slane %v911, %v973
    %v975 = vlaneseq
    %v976 = vshrl.u32 %v975, 7
    %v977 = vsub.s32 0, %v976
    %v978 = vrot.slane %v912, %v977
    %v979 = vlaneseq
    %v980 = vshrl.u32 %v979, 7
    %v981 = vsub.s32 0, %v980
    %v982 = vrot.slane %v913, %v981
    %v983 = vlaneseq
    %v984 = vshrl.u32 %v983, 7
    %v985 = vsub.s32 0, %v984
    %v986 = vrot.slane %v914, %v985
    %v987 = vlaneseq
    %v988 = vshrl.u32 %v987, 7
    %v989 = vsub.s32 0, %v988
    %v990 = vrot.slane %v915, %v989
    %v991 = vlaneseq
    %v992 = vshrl.u32 %v991, 7
    %v993 = vsub.s32 0, %v992
    %v994 = vrot.slane %v916, %v993
    %v995 = vlaneseq
    %v996 = vshrl.u32 %v995, 7
    %v997 = vsub.s32 0, %v996
    %v998 = vrot.slane %v917, %v997
    %v999 = vlaneseq
    %v1000 = vshrl.u32 %v999, 7
    %v1001 = vsub.s32 0, %v1000
    %v1002 = vrot.slane %v918, %v1001
    %vm1003 = vcmask 1041409
    %v1004 = vsel %vm1003, %v946, %v942
    %vm1005 = vcmask 1042434
    %v1006 = vsel %vm1005, %v950, %v1004
    %vm1007 = vcmask 1043459
    %v1008 = vsel %vm1007, %v954, %v1006
    %vm1009 = vcmask 1044484
    %v1010 = vsel %vm1009, %v958, %v1008
    %vm1011 = vcmask 1045509
    %v1012 = vsel %vm1011, %v962, %v1010
    %vm1013 = vcmask 1046534
    %v1014 = vsel %vm1013, %v966, %v1012
    %vm1015 = vcmask 1047559
    %v1016 = vsel %vm1015, %v970, %v1014
    %v1017 = vsel %vm1003, %v978, %v974
    %v1018 = vsel %vm1005, %v982, %v1017
    %v1019 = vsel %vm1007, %v986, %v1018
    %v1020 = vsel %vm1009, %v990, %v1019
    %v1021 = vsel %vm1011, %v994, %v1020
    %v1022 = vsel %vm1013, %v998, %v1021
    %v1023 = vsel %vm1015, %v1002, %v1022
    %1026 = vst.msk [vmem:[#allocation3 + $0x8] sm:$0xff] %vm79, %v1016
    %1027 = vst.msk [vmem:[#allocation3 + $0x20] sm:$0xff] %vm79, %v1023
    %v1028 = vld [vmem:[#allocation3 + $0x7] sm:$0xff]
    %v1029 = vld [vmem:[#allocation3 + $0x1f] sm:$0xff]
    %v1030 = vld [vmem:[#allocation4] sm:$0xff]
    %v1031 = vld [vmem:[#allocation4 + $0x8] sm:$0xff]
    %v1032 = vld [vmem:[#allocation4 + $0x10] sm:$0xff]
    %v1033 = vld [vmem:[#allocation4 + $0x18] sm:$0xff]
    %v1034 = vld [vmem:[#allocation4 + $0x20] sm:$0xff]
    %v1035 = vld [vmem:[#allocation4 + $0x28] sm:$0xff]
    %v1036 = vld [vmem:[#allocation4 + $0x30] sm:$0xff]
    %v1037 = vld [vmem:[#allocation4 + $0x38] sm:$0xff]
    %v1038 = vld [vmem:[#allocation7] sm:$0xff]
    %v1039 = vld [vmem:[#allocation7 + $0x8] sm:$0xff]
    %v1040 = vld [vmem:[#allocation7 + $0x10] sm:$0xff]
    %v1041 = vld [vmem:[#allocation7 + $0x18] sm:$0xff]
    %v1042 = vld [vmem:[#allocation7 + $0x20] sm:$0xff]
    %v1043 = vld [vmem:[#allocation7 + $0x28] sm:$0xff]
    %v1044 = vld [vmem:[#allocation7 + $0x30] sm:$0xff]
    %v1045 = vld [vmem:[#allocation7 + $0x38] sm:$0xff]
    %v1046 = vld [vmem:[#allocation3 + $0x8] sm:$0xff]
    %v1047 = vld [vmem:[#allocation3 + $0x20] sm:$0xff]
    %s1048 = scalar_lea.vmem [#allocation4], 64
    %v1049 = vld [vmem:[%s1048] sm:$0xff]
    %v1050 = vld [vmem:[%s1048 + $0x8] sm:$0xff]
    %v1051 = vld [vmem:[%s1048 + $0x10] sm:$0xff]
    %v1052 = vld [vmem:[%s1048 + $0x18] sm:$0xff]
    %v1053 = vld [vmem:[%s1048 + $0x20] sm:$0xff]
    %v1054 = vld [vmem:[%s1048 + $0x28] sm:$0xff]
    %v1055 = vld [vmem:[%s1048 + $0x30] sm:$0xff]
    %v1056 = vld [vmem:[%s1048 + $0x38] sm:$0xff]
    %v1058 = vsel %vm79, %v1046, 0
    %v1061 = vsel %vm79, %v1047, 0
    %1063 = vmatprep.subr.mxu0 0.0
    %1064 = vmatpush1.msra.mxu0 %v1049
    %1065 = vmatprep.subr.mxu0 0.0
    %1066 = vmatpush1.msra.mxu0 %v1050
    %1067 = vmatprep.subr.mxu0 0.0
    %1068 = vmatpush1.msra.mxu0 %v1051
    %1069 = vmatprep.subr.mxu0 0.0
    %1070 = vmatpush1.msra.mxu0 %v1052
    %1071 = vmatprep.subr.mxu0 0.0
    %1072 = vmatpush1.msra.mxu0 %v1053
    %1073 = vmatprep.subr.mxu0 0.0
    %1074 = vmatpush1.msra.mxu0 %v1054
    %1075 = vmatprep.subr.mxu0 0.0
    %1076 = vmatpush1.msra.mxu0 %v1055
    %1077 = vmatprep.subr.mxu0 0.0
    %1078 = vmatpush1.msra.mxu0 %v1056
    %1079 = vmatprep.subr.mxu0 0.0
    %1080 = vmatpush1.msra.mxu0 0.0
    %1081 = vmatprep.subr.mxu0 0.0
    %1082 = vmatpush1.msra.mxu0 0.0
    %1083 = vmatprep.subr.mxu0 0.0
    %1084 = vmatpush1.msra.mxu0 0.0
    %1085 = vmatprep.subr.mxu0 0.0
    %1086 = vmatpush1.msra.mxu0 0.0
    %1087 = vmatprep.subr.mxu0 0.0
    %1088 = vmatpush1.msra.mxu0 0.0
    %1089 = vmatprep.subr.mxu0 0.0
    %1090 = vmatpush1.msra.mxu0 0.0
    %1091 = vmatprep.subr.mxu0 0.0
    %1092 = vmatpush1.msra.mxu0 0.0
    %1093 = vmatprep.subr.mxu0 0.0
    %1094 = vmatpush1.msra.mxu0 0.0
    %1095 = vmatprep.subr.mxu0 0.0
    %1096 = vmatpush1.msra.mxu0 0.0
    %1097 = vmatprep.subr.mxu0 0.0
    %1098 = vmatpush1.msra.mxu0 0.0
    %1099 = vmatprep.subr.mxu0 0.0
    %1100 = vmatpush1.msra.mxu0 0.0
    %1101 = vmatprep.subr.mxu0 0.0
    %1102 = vmatpush1.msra.mxu0 0.0
    %1103 = vmatprep.subr.mxu0 0.0
    %1104 = vmatpush1.msra.mxu0 0.0
    %1105 = vmatprep.subr.mxu0 0.0
    %1106 = vmatpush1.msra.mxu0 0.0
    %1107 = vmatprep.subr.mxu0 0.0
    %1108 = vmatpush1.msra.mxu0 0.0
    %1109 = vmatprep.subr.mxu0 0.0
    %1110 = vmatpush1.msra.mxu0 0.0
    %1111 = vmatprep.subr.mxu0 0.0
    %1112 = vmatpush1.msra.mxu0 0.0
    %1113 = vmatprep.subr.mxu0 0.0
    %1114 = vmatpush1.msra.mxu0 0.0
    %1115 = vmatprep.subr.mxu0 0.0
    %1116 = vmatpush1.msra.mxu0 0.0
    %1117 = vmatprep.subr.mxu0 0.0
    %1118 = vmatpush1.msra.mxu0 0.0
    %1119 = vmatprep.subr.mxu0 0.0
    %1120 = vmatpush1.msra.mxu0 0.0
    %1121 = vmatprep.subr.mxu0 0.0
    %1122 = vmatpush1.msra.mxu0 0.0
    %1123 = vmatprep.subr.mxu0 0.0
    %1124 = vmatpush1.msra.mxu0 0.0
    %1125 = vmatprep.subr.mxu0 0.0
    %1126 = vmatpush1.msra.mxu0 0.0
    %1127 = vmatprep.mubr.f32.mxu0 0.0
    %1128 = vmatmul.mubr.f32.gmra.mrb[0].mxu0 %v1058
    %v1129 = vpop.f32.mrb[0].mxu0
    %v1130 = vadd.f32 0.0, %v1129
    %v1131 = vpop.f32.mrb[0].mxu0
    %1132 = vmatprep.mubr.f32.mxu0 0.0
    %1133 = vmatmul.mubr.f32.gmra.mrb[0].mxu0 %v1061
    %v1134 = vpop.f32.mrb[0].mxu0
    %v1135 = vadd.f32 0.0, %v1134
    %v1136 = vpop.f32.mrb[0].mxu0
    %1137 = vdwg.mxu0
    %v1139 = vsel %vm79, %v1028, 0
    %v1142 = vsel %vm79, %v1029, 0
    %1144 = vmatprep.subr.mxu0 0.0
    %1145 = vmatpush1.msra.mxu0 %v1030
    %1146 = vmatprep.subr.mxu0 0.0
    %1147 = vmatpush1.msra.mxu0 %v1031
    %1148 = vmatprep.subr.mxu0 0.0
    %1149 = vmatpush1.msra.mxu0 %v1032
    %1150 = vmatprep.subr.mxu0 0.0
    %1151 = vmatpush1.msra.mxu0 %v1033
    %1152 = vmatprep.subr.mxu0 0.0
    %1153 = vmatpush1.msra.mxu0 %v1034
    %1154 = vmatprep.subr.mxu0 0.0
    %1155 = vmatpush1.msra.mxu0 %v1035
    %1156 = vmatprep.subr.mxu0 0.0
    %1157 = vmatpush1.msra.mxu0 %v1036
    %1158 = vmatprep.subr.mxu0 0.0
    %1159 = vmatpush1.msra.mxu0 %v1037
    %1160 = vmatprep.subr.mxu0 0.0
    %1161 = vmatpush1.msra.mxu0 0.0
    %1162 = vmatprep.subr.mxu0 0.0
    %1163 = vmatpush1.msra.mxu0 0.0
    %1164 = vmatprep.subr.mxu0 0.0
    %1165 = vmatpush1.msra.mxu0 0.0
    %1166 = vmatprep.subr.mxu0 0.0
    %1167 = vmatpush1.msra.mxu0 0.0
    %1168 = vmatprep.subr.mxu0 0.0
    %1169 = vmatpush1.msra.mxu0 0.0
    %1170 = vmatprep.subr.mxu0 0.0
    %1171 = vmatpush1.msra.mxu0 0.0
    %1172 = vmatprep.subr.mxu0 0.0
    %1173 = vmatpush1.msra.mxu0 0.0
    %1174 = vmatprep.subr.mxu0 0.0
    %1175 = vmatpush1.msra.mxu0 0.0
    %1176 = vmatprep.subr.mxu0 0.0
    %1177 = vmatpush1.msra.mxu0 0.0
    %1178 = vmatprep.subr.mxu0 0.0
    %1179 = vmatpush1.msra.mxu0 0.0
    %1180 = vmatprep.subr.mxu0 0.0
    %1181 = vmatpush1.msra.mxu0 0.0
    %1182 = vmatprep.subr.mxu0 0.0
    %1183 = vmatpush1.msra.mxu0 0.0
    %1184 = vmatprep.subr.mxu0 0.0
    %1185 = vmatpush1.msra.mxu0 0.0
    %1186 = vmatprep.subr.mxu0 0.0
    %1187 = vmatpush1.msra.mxu0 0.0
    %1188 = vmatprep.subr.mxu0 0.0
    %1189 = vmatpush1.msra.mxu0 0.0
    %1190 = vmatprep.subr.mxu0 0.0
    %1191 = vmatpush1.msra.mxu0 0.0
    %1192 = vmatprep.subr.mxu0 0.0
    %1193 = vmatpush1.msra.mxu0 0.0
    %1194 = vmatprep.subr.mxu0 0.0
    %1195 = vmatpush1.msra.mxu0 0.0
    %1196 = vmatprep.subr.mxu0 0.0
    %1197 = vmatpush1.msra.mxu0 0.0
    %1198 = vmatprep.subr.mxu0 0.0
    %1199 = vmatpush1.msra.mxu0 0.0
    %1200 = vmatprep.subr.mxu0 0.0
    %1201 = vmatpush1.msra.mxu0 0.0
    %1202 = vmatprep.subr.mxu0 0.0
    %1203 = vmatpush1.msra.mxu0 0.0
    %1204 = vmatprep.subr.mxu0 0.0
    %1205 = vmatpush1.msra.mxu0 0.0
    %1206 = vmatprep.subr.mxu0 0.0
    %1207 = vmatpush1.msra.mxu0 0.0
    %1208 = vmatprep.mubr.f32.mxu0 0.0
    %1209 = vmatmul.mubr.f32.gmra.mrb[0].mxu0 %v1139
    %v1210 = vpop.f32.mrb[0].mxu0
    %v1211 = vadd.f32 %v1130, %v1210
    %v1212 = vpop.f32.mrb[0].mxu0
    %1213 = vmatprep.mubr.f32.mxu0 0.0
    %1214 = vmatmul.mubr.f32.gmra.mrb[0].mxu0 %v1142
    %v1215 = vpop.f32.mrb[0].mxu0
    %v1216 = vadd.f32 %v1135, %v1215
    %v1217 = vpop.f32.mrb[0].mxu0
    %1218 = vdwg.mxu0
    %s1219 = scalar_lea.vmem [#allocation7], 64
    %v1220 = vld [vmem:[%s1219] sm:$0xff]
    %v1221 = vld [vmem:[%s1219 + $0x8] sm:$0xff]
    %v1222 = vld [vmem:[%s1219 + $0x10] sm:$0xff]
    %v1223 = vld [vmem:[%s1219 + $0x18] sm:$0xff]
    %v1224 = vld [vmem:[%s1219 + $0x20] sm:$0xff]
    %v1225 = vld [vmem:[%s1219 + $0x28] sm:$0xff]
    %v1226 = vld [vmem:[%s1219 + $0x30] sm:$0xff]
    %v1227 = vld [vmem:[%s1219 + $0x38] sm:$0xff]
    %1228 = vmatprep.subr.mxu0 0.0
    %1229 = vmatpush1.msra.mxu0 %v1220
    %1230 = vmatprep.subr.mxu0 0.0
    %1231 = vmatpush1.msra.mxu0 %v1221
    %1232 = vmatprep.subr.mxu0 0.0
    %1233 = vmatpush1.msra.mxu0 %v1222
    %1234 = vmatprep.subr.mxu0 0.0
    %1235 = vmatpush1.msra.mxu0 %v1223
    %1236 = vmatprep.subr.mxu0 0.0
    %1237 = vmatpush1.msra.mxu0 %v1224
    %1238 = vmatprep.subr.mxu0 0.0
    %1239 = vmatpush1.msra.mxu0 %v1225
    %1240 = vmatprep.subr.mxu0 0.0
    %1241 = vmatpush1.msra.mxu0 %v1226
    %1242 = vmatprep.subr.mxu0 0.0
    %1243 = vmatpush1.msra.mxu0 %v1227
    %1244 = vmatprep.subr.mxu0 0.0
    %1245 = vmatpush1.msra.mxu0 0.0
    %1246 = vmatprep.subr.mxu0 0.0
    %1247 = vmatpush1.msra.mxu0 0.0
    %1248 = vmatprep.subr.mxu0 0.0
    %1249 = vmatpush1.msra.mxu0 0.0
    %1250 = vmatprep.subr.mxu0 0.0
    %1251 = vmatpush1.msra.mxu0 0.0
    %1252 = vmatprep.subr.mxu0 0.0
    %1253 = vmatpush1.msra.mxu0 0.0
    %1254 = vmatprep.subr.mxu0 0.0
    %1255 = vmatpush1.msra.mxu0 0.0
    %1256 = vmatprep.subr.mxu0 0.0
    %1257 = vmatpush1.msra.mxu0 0.0
    %1258 = vmatprep.subr.mxu0 0.0
    %1259 = vmatpush1.msra.mxu0 0.0
    %1260 = vmatprep.subr.mxu0 0.0
    %1261 = vmatpush1.msra.mxu0 0.0
    %1262 = vmatprep.subr.mxu0 0.0
    %1263 = vmatpush1.msra.mxu0 0.0
    %1264 = vmatprep.subr.mxu0 0.0
    %1265 = vmatpush1.msra.mxu0 0.0
    %1266 = vmatprep.subr.mxu0 0.0
    %1267 = vmatpush1.msra.mxu0 0.0
    %1268 = vmatprep.subr.mxu0 0.0
    %1269 = vmatpush1.msra.mxu0 0.0
    %1270 = vmatprep.subr.mxu0 0.0
    %1271 = vmatpush1.msra.mxu0 0.0
    %1272 = vmatprep.subr.mxu0 0.0
    %1273 = vmatpush1.msra.mxu0 0.0
    %1274 = vmatprep.subr.mxu0 0.0
    %1275 = vmatpush1.msra.mxu0 0.0
    %1276 = vmatprep.subr.mxu0 0.0
    %1277 = vmatpush1.msra.mxu0 0.0
    %1278 = vmatprep.subr.mxu0 0.0
    %1279 = vmatpush1.msra.mxu0 0.0
    %1280 = vmatprep.subr.mxu0 0.0
    %1281 = vmatpush1.msra.mxu0 0.0
    %1282 = vmatprep.subr.mxu0 0.0
    %1283 = vmatpush1.msra.mxu0 0.0
    %1284 = vmatprep.subr.mxu0 0.0
    %1285 = vmatpush1.msra.mxu0 0.0
    %1286 = vmatprep.subr.mxu0 0.0
    %1287 = vmatpush1.msra.mxu0 0.0
    %1288 = vmatprep.subr.mxu0 0.0
    %1289 = vmatpush1.msra.mxu0 0.0
    %1290 = vmatprep.subr.mxu0 0.0
    %1291 = vmatpush1.msra.mxu0 0.0
    %1292 = vmatprep.mubr.f32.mxu0 0.0
    %1293 = vmatmul.mubr.f32.gmra.mrb[0].mxu0 %v1058
    %v1294 = vpop.f32.mrb[0].mxu0
    %v1295 = vadd.f32 0.0, %v1294
    %v1296 = vpop.f32.mrb[0].mxu0
    %1297 = vmatprep.mubr.f32.mxu0 0.0
    %1298 = vmatmul.mubr.f32.gmra.mrb[0].mxu0 %v1061
    %v1299 = vpop.f32.mrb[0].mxu0
    %v1300 = vadd.f32 0.0, %v1299
    %v1301 = vpop.f32.mrb[0].mxu0
    %1302 = vdwg.mxu0
    %1303 = vmatprep.subr.mxu0 0.0
    %1304 = vmatpush1.msra.mxu0 %v1038
    %1305 = vmatprep.subr.mxu0 0.0
    %1306 = vmatpush1.msra.mxu0 %v1039
    %1307 = vmatprep.subr.mxu0 0.0
    %1308 = vmatpush1.msra.mxu0 %v1040
    %1309 = vmatprep.subr.mxu0 0.0
    %1310 = vmatpush1.msra.mxu0 %v1041
    %1311 = vmatprep.subr.mxu0 0.0
    %1312 = vmatpush1.msra.mxu0 %v1042
    %1313 = vmatprep.subr.mxu0 0.0
    %1314 = vmatpush1.msra.mxu0 %v1043
    %1315 = vmatprep.subr.mxu0 0.0
    %1316 = vmatpush1.msra.mxu0 %v1044
    %1317 = vmatprep.subr.mxu0 0.0
    %1318 = vmatpush1.msra.mxu0 %v1045
    %1319 = vmatprep.subr.mxu0 0.0
    %1320 = vmatpush1.msra.mxu0 0.0
    %1321 = vmatprep.subr.mxu0 0.0
    %1322 = vmatpush1.msra.mxu0 0.0
    %1323 = vmatprep.subr.mxu0 0.0
    %1324 = vmatpush1.msra.mxu0 0.0
    %1325 = vmatprep.subr.mxu0 0.0
    %1326 = vmatpush1.msra.mxu0 0.0
    %1327 = vmatprep.subr.mxu0 0.0
    %1328 = vmatpush1.msra.mxu0 0.0
    %1329 = vmatprep.subr.mxu0 0.0
    %1330 = vmatpush1.msra.mxu0 0.0
    %1331 = vmatprep.subr.mxu0 0.0
    %1332 = vmatpush1.msra.mxu0 0.0
    %1333 = vmatprep.subr.mxu0 0.0
    %1334 = vmatpush1.msra.mxu0 0.0
    %1335 = vmatprep.subr.mxu0 0.0
    %1336 = vmatpush1.msra.mxu0 0.0
    %1337 = vmatprep.subr.mxu0 0.0
    %1338 = vmatpush1.msra.mxu0 0.0
    %1339 = vmatprep.subr.mxu0 0.0
    %1340 = vmatpush1.msra.mxu0 0.0
    %1341 = vmatprep.subr.mxu0 0.0
    %1342 = vmatpush1.msra.mxu0 0.0
    %1343 = vmatprep.subr.mxu0 0.0
    %1344 = vmatpush1.msra.mxu0 0.0
    %1345 = vmatprep.subr.mxu0 0.0
    %1346 = vmatpush1.msra.mxu0 0.0
    %1347 = vmatprep.subr.mxu0 0.0
    %1348 = vmatpush1.msra.mxu0 0.0
    %1349 = vmatprep.subr.mxu0 0.0
    %1350 = vmatpush1.msra.mxu0 0.0
    %1351 = vmatprep.subr.mxu0 0.0
    %1352 = vmatpush1.msra.mxu0 0.0
    %1353 = vmatprep.subr.mxu0 0.0
    %1354 = vmatpush1.msra.mxu0 0.0
    %1355 = vmatprep.subr.mxu0 0.0
    %1356 = vmatpush1.msra.mxu0 0.0
    %1357 = vmatprep.subr.mxu0 0.0
    %1358 = vmatpush1.msra.mxu0 0.0
    %1359 = vmatprep.subr.mxu0 0.0
    %1360 = vmatpush1.msra.mxu0 0.0
    %1361 = vmatprep.subr.mxu0 0.0
    %1362 = vmatpush1.msra.mxu0 0.0
    %1363 = vmatprep.subr.mxu0 0.0
    %1364 = vmatpush1.msra.mxu0 0.0
    %1365 = vmatprep.subr.mxu0 0.0
    %1366 = vmatpush1.msra.mxu0 0.0
    %1367 = vmatprep.mubr.f32.mxu0 0.0
    %1368 = vmatmul.mubr.f32.gmra.mrb[0].mxu0 %v1139
    %v1369 = vpop.f32.mrb[0].mxu0
    %v1370 = vadd.f32 %v1295, %v1369
    %v1371 = vpop.f32.mrb[0].mxu0
    %1372 = vmatprep.mubr.f32.mxu0 0.0
    %1373 = vmatmul.mubr.f32.gmra.mrb[0].mxu0 %v1142
    %v1374 = vpop.f32.mrb[0].mxu0
    %v1375 = vadd.f32 %v1300, %v1374
    %v1376 = vpop.f32.mrb[0].mxu0
    %1377 = vdwg.mxu0
    %v1378 = vld [vmem:[#allocation3 + $0x9] sm:$0xff]
    %v1379 = vld [vmem:[#allocation3 + $0x21] sm:$0xff]
    %s1380 = scalar_lea.vmem [#allocation4], 128
    %v1381 = vld [vmem:[%s1380] sm:$0xff]
    %v1382 = vld [vmem:[%s1380 + $0x8] sm:$0xff]
    %v1383 = vld [vmem:[%s1380 + $0x10] sm:$0xff]
    %v1384 = vld [vmem:[%s1380 + $0x18] sm:$0xff]
    %v1385 = vld [vmem:[%s1380 + $0x20] sm:$0xff]
    %v1386 = vld [vmem:[%s1380 + $0x28] sm:$0xff]
    %v1387 = vld [vmem:[%s1380 + $0x30] sm:$0xff]
    %v1388 = vld [vmem:[%s1380 + $0x38] sm:$0xff]
    %v1390 = vsel %vm79, %v1378, 0
    %v1393 = vsel %vm79, %v1379, 0
    %1395 = vmatprep.subr.mxu0 0.0
    %1396 = vmatpush1.msra.mxu0 %v1381
    %1397 = vmatprep.subr.mxu0 0.0
    %1398 = vmatpush1.msra.mxu0 %v1382
    %1399 = vmatprep.subr.mxu0 0.0
    %1400 = vmatpush1.msra.mxu0 %v1383
    %1401 = vmatprep.subr.mxu0 0.0
    %1402 = vmatpush1.msra.mxu0 %v1384
    %1403 = vmatprep.subr.mxu0 0.0
    %1404 = vmatpush1.msra.mxu0 %v1385
    %1405 = vmatprep.subr.mxu0 0.0
    %1406 = vmatpush1.msra.mxu0 %v1386
    %1407 = vmatprep.subr.mxu0 0.0
    %1408 = vmatpush1.msra.mxu0 %v1387
    %1409 = vmatprep.subr.mxu0 0.0
    %1410 = vmatpush1.msra.mxu0 %v1388
    %1411 = vmatprep.subr.mxu0 0.0
    %1412 = vmatpush1.msra.mxu0 0.0
    %1413 = vmatprep.subr.mxu0 0.0
    %1414 = vmatpush1.msra.mxu0 0.0
    %1415 = vmatprep.subr.mxu0 0.0
    %1416 = vmatpush1.msra.mxu0 0.0
    %1417 = vmatprep.subr.mxu0 0.0
    %1418 = vmatpush1.msra.mxu0 0.0
    %1419 = vmatprep.subr.mxu0 0.0
    %1420 = vmatpush1.msra.mxu0 0.0
    %1421 = vmatprep.subr.mxu0 0.0
    %1422 = vmatpush1.msra.mxu0 0.0
    %1423 = vmatprep.subr.mxu0 0.0
    %1424 = vmatpush1.msra.mxu0 0.0
    %1425 = vmatprep.subr.mxu0 0.0
    %1426 = vmatpush1.msra.mxu0 0.0
    %1427 = vmatprep.subr.mxu0 0.0
    %1428 = vmatpush1.msra.mxu0 0.0
    %1429 = vmatprep.subr.mxu0 0.0
    %1430 = vmatpush1.msra.mxu0 0.0
    %1431 = vmatprep.subr.mxu0 0.0
    %1432 = vmatpush1.msra.mxu0 0.0
    %1433 = vmatprep.subr.mxu0 0.0
    %1434 = vmatpush1.msra.mxu0 0.0
    %1435 = vmatprep.subr.mxu0 0.0
    %1436 = vmatpush1.msra.mxu0 0.0
    %1437 = vmatprep.subr.mxu0 0.0
    %1438 = vmatpush1.msra.mxu0 0.0
    %1439 = vmatprep.subr.mxu0 0.0
    %1440 = vmatpush1.msra.mxu0 0.0
    %1441 = vmatprep.subr.mxu0 0.0
    %1442 = vmatpush1.msra.mxu0 0.0
    %1443 = vmatprep.subr.mxu0 0.0
    %1444 = vmatpush1.msra.mxu0 0.0
    %1445 = vmatprep.subr.mxu0 0.0
    %1446 = vmatpush1.msra.mxu0 0.0
    %1447 = vmatprep.subr.mxu0 0.0
    %1448 = vmatpush1.msra.mxu0 0.0
    %1449 = vmatprep.subr.mxu0 0.0
    %1450 = vmatpush1.msra.mxu0 0.0
    %1451 = vmatprep.subr.mxu0 0.0
    %1452 = vmatpush1.msra.mxu0 0.0
    %1453 = vmatprep.subr.mxu0 0.0
    %1454 = vmatpush1.msra.mxu0 0.0
    %1455 = vmatprep.subr.mxu0 0.0
    %1456 = vmatpush1.msra.mxu0 0.0
    %1457 = vmatprep.subr.mxu0 0.0
    %1458 = vmatpush1.msra.mxu0 0.0
    %1459 = vmatprep.mubr.f32.mxu0 0.0
    %1460 = vmatmul.mubr.f32.gmra.mrb[0].mxu0 %v1390
    %v1461 = vpop.f32.mrb[0].mxu0
    %v1462 = vadd.f32 0.0, %v1461
    %v1463 = vpop.f32.mrb[0].mxu0
    %1464 = vmatprep.mubr.f32.mxu0 0.0
    %1465 = vmatmul.mubr.f32.gmra.mrb[0].mxu0 %v1393
    %v1466 = vpop.f32.mrb[0].mxu0
    %v1467 = vadd.f32 0.0, %v1466
    %v1468 = vpop.f32.mrb[0].mxu0
    %1469 = vdwg.mxu0
    %v1470 = vadd.f32 %v1211, %v1462
    %v1471 = vadd.f32 %v1216, %v1467
    %s1472 = scalar_lea.vmem [#allocation7], 128
    %v1473 = vld [vmem:[%s1472] sm:$0xff]
    %v1474 = vld [vmem:[%s1472 + $0x8] sm:$0xff]
    %v1475 = vld [vmem:[%s1472 + $0x10] sm:$0xff]
    %v1476 = vld [vmem:[%s1472 + $0x18] sm:$0xff]
    %v1477 = vld [vmem:[%s1472 + $0x20] sm:$0xff]
    %v1478 = vld [vmem:[%s1472 + $0x28] sm:$0xff]
    %v1479 = vld [vmem:[%s1472 + $0x30] sm:$0xff]
    %v1480 = vld [vmem:[%s1472 + $0x38] sm:$0xff]
    %1481 = vmatprep.subr.mxu0 0.0
    %1482 = vmatpush1.msra.mxu0 %v1473
    %1483 = vmatprep.subr.mxu0 0.0
    %1484 = vmatpush1.msra.mxu0 %v1474
    %1485 = vmatprep.subr.mxu0 0.0
    %1486 = vmatpush1.msra.mxu0 %v1475
    %1487 = vmatprep.subr.mxu0 0.0
    %1488 = vmatpush1.msra.mxu0 %v1476
    %1489 = vmatprep.subr.mxu0 0.0
    %1490 = vmatpush1.msra.mxu0 %v1477
    %1491 = vmatprep.subr.mxu0 0.0
    %1492 = vmatpush1.msra.mxu0 %v1478
    %1493 = vmatprep.subr.mxu0 0.0
    %1494 = vmatpush1.msra.mxu0 %v1479
    %1495 = vmatprep.subr.mxu0 0.0
    %1496 = vmatpush1.msra.mxu0 %v1480
    %1497 = vmatprep.subr.mxu0 0.0
    %1498 = vmatpush1.msra.mxu0 0.0
    %1499 = vmatprep.subr.mxu0 0.0
    %1500 = vmatpush1.msra.mxu0 0.0
    %1501 = vmatprep.subr.mxu0 0.0
    %1502 = vmatpush1.msra.mxu0 0.0
    %1503 = vmatprep.subr.mxu0 0.0
    %1504 = vmatpush1.msra.mxu0 0.0
    %1505 = vmatprep.subr.mxu0 0.0
    %1506 = vmatpush1.msra.mxu0 0.0
    %1507 = vmatprep.subr.mxu0 0.0
    %1508 = vmatpush1.msra.mxu0 0.0
    %1509 = vmatprep.subr.mxu0 0.0
    %1510 = vmatpush1.msra.mxu0 0.0
    %1511 = vmatprep.subr.mxu0 0.0
    %1512 = vmatpush1.msra.mxu0 0.0
    %1513 = vmatprep.subr.mxu0 0.0
    %1514 = vmatpush1.msra.mxu0 0.0
    %1515 = vmatprep.subr.mxu0 0.0
    %1516 = vmatpush1.msra.mxu0 0.0
    %1517 = vmatprep.subr.mxu0 0.0
    %1518 = vmatpush1.msra.mxu0 0.0
    %1519 = vmatprep.subr.mxu0 0.0
    %1520 = vmatpush1.msra.mxu0 0.0
    %1521 = vmatprep.subr.mxu0 0.0
    %1522 = vmatpush1.msra.mxu0 0.0
    %1523 = vmatprep.subr.mxu0 0.0
    %1524 = vmatpush1.msra.mxu0 0.0
    %1525 = vmatprep.subr.mxu0 0.0
    %1526 = vmatpush1.msra.mxu0 0.0
    %1527 = vmatprep.subr.mxu0 0.0
    %1528 = vmatpush1.msra.mxu0 0.0
    %1529 = vmatprep.subr.mxu0 0.0
    %1530 = vmatpush1.msra.mxu0 0.0
    %1531 = vmatprep.subr.mxu0 0.0
    %1532 = vmatpush1.msra.mxu0 0.0
    %1533 = vmatprep.subr.mxu0 0.0
    %1534 = vmatpush1.msra.mxu0 0.0
    %1535 = vmatprep.subr.mxu0 0.0
    %1536 = vmatpush1.msra.mxu0 0.0
    %1537 = vmatprep.subr.mxu0 0.0
    %1538 = vmatpush1.msra.mxu0 0.0
    %1539 = vmatprep.subr.mxu0 0.0
    %1540 = vmatpush1.msra.mxu0 0.0
    %1541 = vmatprep.subr.mxu0 0.0
    %1542 = vmatpush1.msra.mxu0 0.0
    %1543 = vmatprep.subr.mxu0 0.0
    %1544 = vmatpush1.msra.mxu0 0.0
    %1545 = vmatprep.mubr.f32.mxu0 0.0
    %1546 = vmatmul.mubr.f32.gmra.mrb[0].mxu0 %v1390
    %v1547 = vpop.f32.mrb[0].mxu0
    %v1548 = vadd.f32 0.0, %v1547
    %v1549 = vpop.f32.mrb[0].mxu0
    %1550 = vmatprep.mubr.f32.mxu0 0.0
    %1551 = vmatmul.mubr.f32.gmra.mrb[0].mxu0 %v1393
    %v1552 = vpop.f32.mrb[0].mxu0
    %v1553 = vadd.f32 0.0, %v1552
    %v1554 = vpop.f32.mrb[0].mxu0
    %1555 = vdwg.mxu0
    %v1556 = vadd.f32 %v1370, %v1548
    %v1557 = vadd.f32 %v1375, %v1553
    %v1558 = vld [vmem:[%s8] sm:$0x1]
    %v1560 = vlaneseq
    %v1561 = vshrl.u32 %v1560, 7
    %v1562 = vsub.s32 0, %v1561
    %v1563 = vrot.slane %v1558, %v1562
    %v1565 = vadd.f32 %v1470, %v1563
    %v1566 = vadd.f32 %v1471, %v1563
    %v1567 = vmax.f32 %v1565, 0.0
    %v1568 = vmax.f32 %v1566, 0.0
    %v1569 = vld [vmem:[%s9] sm:$0x1]
    %v1571 = vlaneseq
    %v1572 = vshrl.u32 %v1571, 7
    %v1573 = vsub.s32 0, %v1572
    %v1574 = vrot.slane %v1569, %v1573
    %v1576 = vmul.f32 %v1567, %v1574
    %v1577 = vmul.f32 %v1568, %v1574
    %v1578 = vld [vmem:[%s10] sm:$0x1]
    %v1580 = vlaneseq
    %v1581 = vshrl.u32 %v1580, 7
    %v1582 = vsub.s32 0, %v1581
    %v1583 = vrot.slane %v1578, %v1582
    %v1585 = vadd.f32 %v1576, %v1583
    %v1586 = vadd.f32 %v1577, %v1583
    %v1587 = vadd.f32 %v1556, %v1563
    %v1588 = vadd.f32 %v1557, %v1563
    %v1589 = vmax.f32 %v1587, 0.0
    %v1590 = vmax.f32 %v1588, 0.0
    %v1591 = vmul.f32 %v1589, %v1574
    %v1592 = vmul.f32 %v1590, %v1574
    %v1593 = vadd.f32 %v1591, %v1583
    %v1594 = vadd.f32 %v1592, %v1583
    %v1595 = vmax.f32 %v1585, %v1593
    %v1596 = vmax.f32 %v1586, %v1594
    %v1599 = vcombine.high %v1595, %v1595
    %v1601 = vunpack.c.l.s4 1983009808
    %v1602 = vunpack.c.0.s8 %v1601
    %v1603 = vlaneseq
    %v1604 = vshrl.u32 %v1603, 7
    %v1605 = vsub.s32 %v1602, %v1604
    %v1606 = vrot.slane %v1595, %v1605
    %v1608 = vunpack.c.l.s4 1983009808
    %v1609 = vunpack.c.0.s8 %v1608
    %v1610 = vlaneseq
    %v1611 = vshrl.u32 %v1610, 7
    %v1612 = vsub.s32 %v1609, %v1611
    %v1613 = vrot.slane %v1599, %v1612
    %v1614 = vcombine.high %v1606, %v1606
    %v1615 = vcombine.high %v1613, %v1613
    %v1616 = vcombine.high %v1596, %v1596
    %v1618 = vunpack.c.l.s4 1983009808
    %v1619 = vunpack.c.0.s8 %v1618
    %v1620 = vlaneseq
    %v1621 = vshrl.u32 %v1620, 7
    %v1622 = vsub.s32 %v1619, %v1621
    %v1623 = vrot.slane %v1596, %v1622
    %v1625 = vunpack.c.l.s4 1983009808
    %v1626 = vunpack.c.0.s8 %v1625
    %v1627 = vlaneseq
    %v1628 = vshrl.u32 %v1627, 7
    %v1629 = vsub.s32 %v1626, %v1628
    %v1630 = vrot.slane %v1616, %v1629
    %v1631 = vcombine.high %v1623, %v1623
    %v1632 = vcombine.high %v1630, %v1630
    %v1641 = vrot.slane %v1606, 7
    %v1642 = vrot.slane %v1641, 2
    %v1643 = vrot.slane %v1614, 7
    %v1644 = vrot.slane %v1643, 2
    %v1645 = vrot.slane %v1613, 7
    %v1646 = vrot.slane %v1645, 2
    %v1647 = vrot.slane %v1615, 7
    %v1648 = vrot.slane %v1647, 2
    %v1649 = vrot.slane %v1623, 7
    %v1650 = vrot.slane %v1649, 2
    %v1651 = vrot.slane %v1631, 7
    %v1652 = vrot.slane %v1651, 2
    %v1653 = vrot.slane %v1630, 7
    %v1654 = vrot.slane %v1653, 2
    %v1655 = vrot.slane %v1632, 7
    %v1656 = vrot.slane %v1655, 2
    %v1665 = vmax.f32 %v1606, %v1642
    %v1666 = vmax.f32 %v1614, %v1644
    %v1667 = vmax.f32 %v1613, %v1646
    %v1668 = vmax.f32 %v1615, %v1648
    %v1669 = vmax.f32 %v1623, %v1650
    %v1670 = vmax.f32 %v1631, %v1652
    %v1671 = vmax.f32 %v1630, %v1654
    %v1672 = vmax.f32 %v1632, %v1656
    %v1681 = vlaneseq
    %v1682 = vshrl.u32 %v1681, 7
    %v1683 = vsub.s32 0, %v1682
    %v1684 = vrot.slane %v1665, %v1683
    %v1685 = vlaneseq
    %v1686 = vshrl.u32 %v1685, 7
    %v1687 = vsub.s32 0, %v1686
    %v1688 = vrot.slane %v1666, %v1687
    %v1689 = vlaneseq
    %v1690 = vshrl.u32 %v1689, 7
    %v1691 = vsub.s32 0, %v1690
    %v1692 = vrot.slane %v1667, %v1691
    %v1693 = vlaneseq
    %v1694 = vshrl.u32 %v1693, 7
    %v1695 = vsub.s32 0, %v1694
    %v1696 = vrot.slane %v1668, %v1695
    %v1697 = vlaneseq
    %v1698 = vshrl.u32 %v1697, 7
    %v1699 = vsub.s32 0, %v1698
    %v1700 = vrot.slane %v1669, %v1699
    %v1701 = vlaneseq
    %v1702 = vshrl.u32 %v1701, 7
    %v1703 = vsub.s32 0, %v1702
    %v1704 = vrot.slane %v1670, %v1703
    %v1705 = vlaneseq
    %v1706 = vshrl.u32 %v1705, 7
    %v1707 = vsub.s32 0, %v1706
    %v1708 = vrot.slane %v1671, %v1707
    %v1709 = vlaneseq
    %v1710 = vshrl.u32 %v1709, 7
    %v1711 = vsub.s32 0, %v1710
    %v1712 = vrot.slane %v1672, %v1711
    %v1713 = vsel %vm1003, %v1688, %v1684
    %v1714 = vsel %vm1005, %v1692, %v1713
    %v1715 = vsel %vm1007, %v1696, %v1714
    %v1716 = vsel %vm1003, %v1704, %v1700
    %v1717 = vsel %vm1005, %v1708, %v1716
    %v1718 = vsel %vm1007, %v1712, %v1717
    %vm1721 = vcmask 519168
    %v1722 = vsel %vm1721, %v1715, 0.0
    %v1723 = vrot.slane %v1722, 4
    %v1724 = vadd.f32 %v1722, %v1723
    %v1725 = vrot.slane %v1724, 2
    %v1726 = vadd.f32 %v1724, %v1725
    %v1727 = vrot.slane %v1726, 1
    %v1728 = vadd.f32 %v1726, %v1727
    %v1729 = vsel %vm1721, %v1718, 0.0
    %v1730 = vrot.slane %v1729, 4
    %v1731 = vadd.f32 %v1729, %v1730
    %v1732 = vrot.slane %v1731, 2
    %v1733 = vadd.f32 %v1731, %v1732
    %v1734 = vrot.slane %v1733, 1
    %v1735 = vadd.f32 %v1733, %v1734
    %v1736 = vld [vmem:[%s11] sm:$0xff]
    %v1737 = vld [vmem:[%s11 + $0x8] sm:$0xff]
    %v1738 = vld [vmem:[%s11 + $0x10] sm:$0xff]
    %v1739 = vld [vmem:[%s11 + $0x18] sm:$0xff]
    %v1740 = vld [vmem:[%s11 + $0x20] sm:$0xff]
    %v1741 = vld [vmem:[%s11 + $0x28] sm:$0xff]
    %v1742 = vld [vmem:[%s11 + $0x30] sm:$0xff]
    %v1743 = vld [vmem:[%s11 + $0x38] sm:$0xff]
    %v1744 = vld [vmem:[%s12] sm:$0x1]
    %v1746 = vlaneseq
    %v1747 = vshrl.u32 %v1746, 7
    %v1748 = vsub.s32 0, %v1747
    %v1749 = vrot.slane %v1744, %v1748
    %v1753 = vrot.slane %v1735, 7
    %v1754 = vsel %vm1003, %v1753, %v1728
    %v1755 = vsel %vm79, %v1754, 0
    %1757 = vmatprep.subr.mxu0 0.0
    %1758 = vmatpush1.msra.mxu0 %v1736
    %1759 = vmatprep.subr.mxu0 0.0
    %1760 = vmatpush1.msra.mxu0 %v1737
    %1761 = vmatprep.subr.mxu0 0.0
    %1762 = vmatpush1.msra.mxu0 %v1738
    %1763 = vmatprep.subr.mxu0 0.0
    %1764 = vmatpush1.msra.mxu0 %v1739
    %1765 = vmatprep.subr.mxu0 0.0
    %1766 = vmatpush1.msra.mxu0 %v1740
    %1767 = vmatprep.subr.mxu0 0.0
    %1768 = vmatpush1.msra.mxu0 %v1741
    %1769 = vmatprep.subr.mxu0 0.0
    %1770 = vmatpush1.msra.mxu0 %v1742
    %1771 = vmatprep.subr.mxu0 0.0
    %1772 = vmatpush1.msra.mxu0 %v1743
    %1773 = vmatprep.subr.mxu0 0.0
    %1774 = vmatpush1.msra.mxu0 0.0
    %1775 = vmatprep.subr.mxu0 0.0
    %1776 = vmatpush1.msra.mxu0 0.0
    %1777 = vmatprep.subr.mxu0 0.0
    %1778 = vmatpush1.msra.mxu0 0.0
    %1779 = vmatprep.subr.mxu0 0.0
    %1780 = vmatpush1.msra.mxu0 0.0
    %1781 = vmatprep.subr.mxu0 0.0
    %1782 = vmatpush1.msra.mxu0 0.0
    %1783 = vmatprep.subr.mxu0 0.0
    %1784 = vmatpush1.msra.mxu0 0.0
    %1785 = vmatprep.subr.mxu0 0.0
    %1786 = vmatpush1.msra.mxu0 0.0
    %1787 = vmatprep.subr.mxu0 0.0
    %1788 = vmatpush1.msra.mxu0 0.0
    %1789 = vmatprep.subr.mxu0 0.0
    %1790 = vmatpush1.msra.mxu0 0.0
    %1791 = vmatprep.subr.mxu0 0.0
    %1792 = vmatpush1.msra.mxu0 0.0
    %1793 = vmatprep.subr.mxu0 0.0
    %1794 = vmatpush1.msra.mxu0 0.0
    %1795 = vmatprep.subr.mxu0 0.0
    %1796 = vmatpush1.msra.mxu0 0.0
    %1797 = vmatprep.subr.mxu0 0.0
    %1798 = vmatpush1.msra.mxu0 0.0
    %1799 = vmatprep.subr.mxu0 0.0
    %1800 = vmatpush1.msra.mxu0 0.0
    %1801 = vmatprep.subr.mxu0 0.0
    %1802 = vmatpush1.msra.mxu0 0.0
    %1803 = vmatprep.subr.mxu0 0.0
    %1804 = vmatpush1.msra.mxu0 0.0
    %1805 = vmatprep.subr.mxu0 0.0
    %1806 = vmatpush1.msra.mxu0 0.0
    %1807 = vmatprep.subr.mxu0 0.0
    %1808 = vmatpush1.msra.mxu0 0.0
    %1809 = vmatprep.subr.mxu0 0.0
    %1810 = vmatpush1.msra.mxu0 0.0
    %1811 = vmatprep.subr.mxu0 0.0
    %1812 = vmatpush1.msra.mxu0 0.0
    %1813 = vmatprep.subr.mxu0 0.0
    %1814 = vmatpush1.msra.mxu0 0.0
    %1815 = vmatprep.subr.mxu0 0.0
    %1816 = vmatpush1.msra.mxu0 0.0
    %1817 = vmatprep.subr.mxu0 0.0
    %1818 = vmatpush1.msra.mxu0 0.0
    %1819 = vmatprep.subr.mxu0 0.0
    %1820 = vmatpush1.msra.mxu0 0.0
    %1821 = vmatprep.mubr.f32.mxu0 0.0
    %1822 = vmatmul.mubr.f32.gmra.mrb[0].mxu0 %v1755
    %v1823 = vpop.f32.mrb[0].mxu0
    %v1824 = vadd.f32 %v1749, %v1823
    %v1825 = vpop.f32.mrb[0].mxu0
    %1826 = vdwg.mxu0
    %v1827 = vmax.f32 %v1824, 0.0
    %v1828 = vld [vmem:[%s13] sm:$0xff]
    %v1829 = vld [vmem:[%s13 + $0x8] sm:$0xff]
    %v1830 = vld [vmem:[%s13 + $0x10] sm:$0xff]
    %v1831 = vld [vmem:[%s13 + $0x18] sm:$0xff]
    %v1832 = vld [vmem:[%s14] sm:$0x1]
    %v1834 = vlaneseq
    %v1835 = vshrl.u32 %v1834, 7
    %v1836 = vsub.s32 0, %v1835
    %v1837 = vrot.slane %v1832, %v1836
    %vm1839 = vcmask 261120
    %v1841 = vsel %vm1839, %v1827, 0
    %1843 = vmatprep.subr.mxu0 0.0
    %1844 = vmatpush1.msra.mxu0 %v1828
    %1845 = vmatprep.subr.mxu0 0.0
    %1846 = vmatpush1.msra.mxu0 %v1829
    %1847 = vmatprep.subr.mxu0 0.0
    %1848 = vmatpush1.msra.mxu0 %v1830
    %1849 = vmatprep.subr.mxu0 0.0
    %1850 = vmatpush1.msra.mxu0 %v1831
    %1851 = vmatprep.subr.mxu0 0.0
    %1852 = vmatpush1.msra.mxu0 0.0
    %1853 = vmatprep.subr.mxu0 0.0
    %1854 = vmatpush1.msra.mxu0 0.0
    %1855 = vmatprep.subr.mxu0 0.0
    %1856 = vmatpush1.msra.mxu0 0.0
    %1857 = vmatprep.subr.mxu0 0.0
    %1858 = vmatpush1.msra.mxu0 0.0
    %1859 = vmatprep.subr.mxu0 0.0
    %1860 = vmatpush1.msra.mxu0 0.0
    %1861 = vmatprep.subr.mxu0 0.0
    %1862 = vmatpush1.msra.mxu0 0.0
    %1863 = vmatprep.subr.mxu0 0.0
    %1864 = vmatpush1.msra.mxu0 0.0
    %1865 = vmatprep.subr.mxu0 0.0
    %1866 = vmatpush1.msra.mxu0 0.0
    %1867 = vmatprep.subr.mxu0 0.0
    %1868 = vmatpush1.msra.mxu0 0.0
    %1869 = vmatprep.subr.mxu0 0.0
    %1870 = vmatpush1.msra.mxu0 0.0
    %1871 = vmatprep.subr.mxu0 0.0
    %1872 = vmatpush1.msra.mxu0 0.0
    %1873 = vmatprep.subr.mxu0 0.0
    %1874 = vmatpush1.msra.mxu0 0.0
    %1875 = vmatprep.subr.mxu0 0.0
    %1876 = vmatpush1.msra.mxu0 0.0
    %1877 = vmatprep.subr.mxu0 0.0
    %1878 = vmatpush1.msra.mxu0 0.0
    %1879 = vmatprep.subr.mxu0 0.0
    %1880 = vmatpush1.msra.mxu0 0.0
    %1881 = vmatprep.subr.mxu0 0.0
    %1882 = vmatpush1.msra.mxu0 0.0
    %1883 = vmatprep.subr.mxu0 0.0
    %1884 = vmatpush1.msra.mxu0 0.0
    %1885 = vmatprep.subr.mxu0 0.0
    %1886 = vmatpush1.msra.mxu0 0.0
    %1887 = vmatprep.subr.mxu0 0.0
    %1888 = vmatpush1.msra.mxu0 0.0
    %1889 = vmatprep.subr.mxu0 0.0
    %1890 = vmatpush1.msra.mxu0 0.0
    %1891 = vmatprep.subr.mxu0 0.0
    %1892 = vmatpush1.msra.mxu0 0.0
    %1893 = vmatprep.subr.mxu0 0.0
    %1894 = vmatpush1.msra.mxu0 0.0
    %1895 = vmatprep.subr.mxu0 0.0
    %1896 = vmatpush1.msra.mxu0 0.0
    %1897 = vmatprep.subr.mxu0 0.0
    %1898 = vmatpush1.msra.mxu0 0.0
    %1899 = vmatprep.subr.mxu0 0.0
    %1900 = vmatpush1.msra.mxu0 0.0
    %1901 = vmatprep.subr.mxu0 0.0
    %1902 = vmatpush1.msra.mxu0 0.0
    %1903 = vmatprep.subr.mxu0 0.0
    %1904 = vmatpush1.msra.mxu0 0.0
    %1905 = vmatprep.subr.mxu0 0.0
    %1906 = vmatpush1.msra.mxu0 0.0
    %1907 = vmatprep.mubr.f32.mxu0 0.0
    %1908 = vmatmul.mubr.f32.gmra.mrb[0].mxu0 %v1841
    %v1909 = vpop.f32.mrb[0].mxu0
    %v1910 = vadd.f32 %v1837, %v1909
    %v1911 = vpop.f32.mrb[0].mxu0
    %1912 = vdwg.mxu0
    %vm1913 = vcmask 74752
    %1914 = vst.msk [vmem:[#allocation9] sm:$0x3] %vm1913, %v1910
    // Predicated region
    $region70: #{net_forward.1} parent=1 // pred_check
      _
    $region71: #{net_forward.1} parent=1 // pred_check_branch
      %1916 = sbr.rel (0) target = $region73
    $region72: #{net_forward.1} parent=1 // pred_region
      %s1918 = ssub.s32 32, 32
      %1919 = vsyncadd [#allocation6], %s1918
      %s1921 = sshll.u32 [#allocation9], 4
      %s1922 = int_to_ptr.vmem [resolvable:$true] %s1921
      %1924 = dma.vmem_to_hbm [thread:$0]  %s1922, 32, %s15, [#allocation6]
    $region73: #{net_forward.1} parent=1 // pred_fallthru
      _
    // Predicated region
    $region74: #{net_forward.1} parent=1 // pred_check
      _
    $region75: #{net_forward.1} parent=1 // pred_check_branch
      %1926 = sbr.rel (0) target = $region77
    $region76: #{net_forward.1} parent=1 // pred_region
      %1927 = dma.done [#allocation6], 32
    $region77: #{net_forward.1} parent=1 // pred_fallthru
      _
    %1928 = vsyncpa [#allocation5], 1
    %1929 = vsyncpa [#allocation8], 1
    %1930 = vsyncpa [#allocation6], 1

</llo_original>
